<compile_context>
chip_gen: v7x
topology: tpu7x:2x2x1
jax: 0.10.0
libtpu: 0.0.40
codegen_flags: <defaults>
</compile_context>

<pallas_src>
import jax
import jax.numpy as jnp
from jax.experimental import pallas as pl
from jax.experimental.pallas import tpu as pltpu

MAX_SCALES = 4
KSIZE = 3
BN_EPS = 1e-5
LANE = 128
TILE_M_CAP = 1024                     # rows per conv grid step
TILE_H_CAP = 32                       # full-res rows per combine grid step
VMEM_LIMIT = 32 * 1024 * 1024


# ---------------------------------------------------------------------------
# Pallas kernels
# ---------------------------------------------------------------------------
def _conv_fused_kernel(p_ref, w_ref, shift_ref, o_ref):
    """One M-tile of relu(patches @ w_folded + shift).

    bias, per-scale BN(eval) and the softmax scale weight are pre-folded into
    w_folded / shift by the wrapper, so this is a single MXU matmul (bf16 in,
    f32 accumulate) plus a VPU add + relu; the result is stored bf16.
    """
    z = jnp.dot(p_ref[...], w_ref[...], preferred_element_type=jnp.float32)
    o_ref[...] = jnp.maximum(z + shift_ref[...], 0.0).astype(o_ref.dtype)


def _combine_bn_kernel(*refs):
    """Fused nearest-upsample (along H) + sum over scales + final BN (eval).

    refs = (y_0, ..., y_{S-1}, bn_scale, bn_shift, out).
    y_s block: (1, TH >> s, W, Cpad) bf16.  The maps are already replicated
    along W by the wrapper, so only the H broadcast happens in VMEM; it only
    touches outer dims (last two dims (W, Cpad) untouched), i.e. a layout
    no-op.  Accumulation and the final BN are done in f32.
    """
    y_refs = refs[:MAX_SCALES]
    g_ref, b_ref, o_ref = refs[MAX_SCALES:]

    acc = y_refs[0][0].astype(jnp.float32)              # (TH, W, C) f32
    th, w, c = acc.shape
    for s in range(1, MAX_SCALES):
        y = y_refs[s][0].astype(jnp.float32)            # (TH >> s, W, C)
        r = 1 << s
        bh = y.shape[0]
        y = jnp.broadcast_to(y[:, None, :, :], (bh, r, w, c)).reshape(th, w, c)
        acc = acc + y

    o_ref[0] = acc * g_ref[0] + b_ref[0]


# ---------------------------------------------------------------------------
# pallas_call wrappers
# ---------------------------------------------------------------------------
def _pick_tile_m(m, cap=TILE_M_CAP):
    """Largest M-tile <= cap that divides m and is a multiple of 8."""
    if m <= cap:
        return m
    for t in range(cap - cap % 8, 7, -8):
        if m % t == 0:
            return t
    return m  # fallback: single block (still correct)


def _pick_tile_h(h, cap=TILE_H_CAP):
    """Largest multiple of 2**(S-1) that divides h, capped at `cap`."""
    down = 1 << (MAX_SCALES - 1)
    best = down
    t = down
    while t <= min(h, cap):
        if h % t == 0:
            best = t
        t += down
    return best


def _conv_fused(patches, w_folded, shift):
    m, k = patches.shape
    c = w_folded.shape[1]
    tm = _pick_tile_m(m)
    cost = pl.CostEstimate(
        flops=2 * m * k * c,
        transcendentals=0,
        bytes_accessed=m * k * patches.dtype.itemsize
        + k * c * w_folded.dtype.itemsize + c * 4 + m * c * 2)
    return pl.pallas_call(
        _conv_fused_kernel,
        out_shape=jax.ShapeDtypeStruct((m, c), jnp.bfloat16),
        grid=(m // tm,),
        in_specs=[
            pl.BlockSpec((tm, k), lambda i: (i, 0)),
            pl.BlockSpec((k, c), lambda i: (0, 0)),    # VMEM-resident weights
            pl.BlockSpec((1, c), lambda i: (0, 0)),    # VMEM-resident shift
        ],
        out_specs=pl.BlockSpec((tm, c), lambda i: (i, 0)),
        compiler_params=pltpu.CompilerParams(
            dimension_semantics=("parallel",),
            vmem_limit_bytes=VMEM_LIMIT),
        cost_estimate=cost,
    )(patches, w_folded, shift)


def _combine_bn(ys, last_scale, last_shift):
    n, h, w, c = ys[0].shape
    th = _pick_tile_h(h)                                # full-res rows per step

    in_specs = []
    for s in range(MAX_SCALES):
        bh = th >> s
        in_specs.append(pl.BlockSpec((1, bh, w, c), lambda ni, ti: (ni, ti, 0, 0)))
    in_specs += [
        pl.BlockSpec((1, 1, c), lambda ni, ti: (0, 0, 0)),
        pl.BlockSpec((1, 1, c), lambda ni, ti: (0, 0, 0)),
    ]

    bytes_in = sum(int(y.size) * y.dtype.itemsize for y in ys) + 2 * c * 4
    cost = pl.CostEstimate(
        flops=(MAX_SCALES + 2) * n * h * w * c,
        transcendentals=0,
        bytes_accessed=bytes_in + n * h * w * c * 4)

    return pl.pallas_call(
        _combine_bn_kernel,
        out_shape=jax.ShapeDtypeStruct((n, h, w, c), jnp.float32),
        grid=(n, h // th),
        in_specs=in_specs,
        out_specs=pl.BlockSpec((1, th, w, c), lambda ni, ti: (ni, ti, 0, 0)),
        compiler_params=pltpu.CompilerParams(
            dimension_semantics=("parallel", "parallel"),
            vmem_limit_bytes=VMEM_LIMIT),
        cost_estimate=cost,
    )(*ys, last_scale, last_shift)


# ---------------------------------------------------------------------------
# JAX glue (im2col / pooling / parameter folding)
# ---------------------------------------------------------------------------
def _im2col(x_nchw):
    """3x3 patches, pad=1, stride=1 -> (N*H*W, Cin*9), feature = ci*9 + kh*3 + kw."""
    n, c, h, w = x_nchw.shape
    p = jax.lax.conv_general_dilated_patches(
        x_nchw, filter_shape=(KSIZE, KSIZE), window_strides=(1, 1),
        padding=((1, 1), (1, 1)),
        dimension_numbers=("NCHW", "OIHW", "NHWC"))
    return p.reshape(n * h * w, c * KSIZE * KSIZE)


def _max_pool2(x_nchw):
    n, c, h, w = x_nchw.shape
    return x_nchw.reshape(n, c, h // 2, 2, w // 2, 2).max(axis=(3, 5))


def _bn_scale_shift(gamma, beta, mean, var):
    inv = gamma / jnp.sqrt(var + BN_EPS)
    return inv, beta - mean * inv


def _pad_last(a, target):
    pad = target - a.shape[-1]
    if pad == 0:
        return a
    return jnp.pad(a, [(0, 0)] * (a.ndim - 1) + [(0, pad)])


def sconv2d_forward(x, params):
    """x: (N, Cin, H, W) float32 NCHW -> (N, Cout, H, W) float32 NCHW."""
    n, cin, h, w = x.shape
    down = 1 << (MAX_SCALES - 1)
    assert h % down == 0 and w % down == 0, \
        "H, W must be divisible by 2**(max_scales-1)"

    conv_w = params["conv_w"]                      # (Cout, Cin, 3, 3) shared conv[0]
    conv_b = params["conv_b"]
    cout = conv_w.shape[0]
    c_pad = ((cout + LANE - 1) // LANE) * LANE     # lane-dense output columns
    wm = conv_w.transpose(1, 2, 3, 0).reshape(cin * KSIZE * KSIZE, cout)

    sel = jax.nn.softmax(params["alpha"] * params["factor"])   # (S,), strictly > 0

    lx = x
    ys = []
    for idx in range(MAX_SCALES):
        hs, ws = lx.shape[2], lx.shape[3]
        bn_s, bn_b = _bn_scale_shift(params["bn_gamma"][idx], params["bn_beta"][idx],
                                     params["bn_mean"][idx], params["bn_var"][idx])
        # Fold conv bias + BN(eval) + softmax weight into the matmul:
        #   sel * relu(BN(Wx + b)) == relu( x @ (W*bn_s*sel) + (b*bn_s + bn_b)*sel )
        col_scale = bn_s * sel[idx]
        w_fold = _pad_last(wm * col_scale[None, :], c_pad).astype(jnp.bfloat16)
        shift = _pad_last(((conv_b * bn_s + bn_b) * sel[idx]).reshape(1, cout), c_pad)

        patches = _im2col(lx).astype(jnp.bfloat16)          # (N*Hs*Ws, Cin*9)
        y2d = _conv_fused(patches, w_fold, shift)           # (N*Hs*Ws, Cpad) bf16
        y = y2d.reshape(n, hs, ws, c_pad)
        if idx > 0:
            # Pre-replicate along W (XLA, bf16) so the combine kernel only has
            # to broadcast along H (outer dims only) inside VMEM.
            y = jnp.repeat(y, 1 << idx, axis=2)             # (n, hs, w, c_pad)
        ys.append(y)
        if idx + 1 < MAX_SCALES:
            lx = _max_pool2(lx)                             # feeds next scale

    l_s, l_b = _bn_scale_shift(params["lastbn_gamma"], params["lastbn_beta"],
                               params["lastbn_mean"], params["lastbn_var"])
    last_scale = _pad_last(l_s.reshape(1, 1, cout), c_pad)
    last_shift = _pad_last(l_b.reshape(1, 1, cout), c_pad)

    out_nhwc = _combine_bn(ys, last_scale, last_shift)      # (n, h, w, c_pad) f32
    return out_nhwc[..., :cout].transpose(0, 3, 1, 2)       # back to NCHW


# ---------------------------------------------------------------------------
# Pure-JAX reference (independent im2col, f32 HIGHEST) for correctness check
# ---------------------------------------------------------------------------
def _im2col_ref(x_nchw):
    n, c, h, w = x_nchw.shape
    xp = jnp.pad(x_nchw, ((0, 0), (0, 0), (1, 1), (1, 1)))
    cols = []
    for ci in range(c):
        for kh in range(KSIZE):
            for kw in range(KSIZE):
                cols.append(xp[:, ci, kh:kh + h, kw:kw + w])
    patches = jnp.stack(cols, axis=-1)
    return patches.reshape(n * h * w, c * KSIZE * KSIZE)


def sconv2d_reference(x, params):
    n, cin, h, w = x.shape
    conv_w = params["conv_w"]
    cout = conv_w.shape[0]
    wm = conv_w.transpose(1, 2, 3, 0).reshape(cin * KSIZE * KSIZE, cout)
    sel = jax.nn.softmax(params["alpha"] * params["factor"])

    lx = x
    ly = []
    for idx in range(MAX_SCALES):
        hs, ws = lx.shape[2], lx.shape[3]
        p = _im2col_ref(lx)
        z = jnp.dot(p, wm, precision=jax.lax.Precision.HIGHEST) + params["conv_b"][None, :]
        g, b = params["bn_gamma"][idx], params["bn_beta"][idx]
        m, v = params["bn_mean"][idx], params["bn_var"][idx]
        z = (z - m) / jnp.sqrt(v + BN_EPS) * g + b
        z = jnp.maximum(z, 0.0)
        y = z.reshape(n, hs, ws, cout)
        r = 2 ** idx
        y = jnp.repeat(jnp.repeat(y, r, axis=1), r, axis=2)
        ly.append(y)
        lx = _max_pool2(lx)

    ys = jnp.stack(ly, axis=0)                     # (S, N, H, W, Cout)
    out = (ys * sel[:, None, None, None, None]).sum(0)
    g, b = params["lastbn_gamma"], params["lastbn_beta"]
    m, v = params["lastbn_mean"], params["lastbn_var"]
    out = (out - m) / jnp.sqrt(v + BN_EPS) * g + b
    return out.transpose(0, 3, 1, 2)


# ---------------------------------------------------------------------------
def make_params(key, cin, cout):
    ks = jax.random.split(key, 11)
    return {
        "conv_w": 0.1 * jax.random.normal(ks[0], (cout, cin, KSIZE, KSIZE), jnp.float32),
        "conv_b": 0.1 * jax.random.normal(ks[1], (cout,), jnp.float32),
        "alpha": jax.random.normal(ks[2], (MAX_SCALES,), jnp.float32),
        "factor": jnp.float32(1.0),                # lf=False, init_factor=1
        "bn_gamma": 1.0 + 0.1 * jax.random.normal(ks[3], (MAX_SCALES, cout), jnp.float32),
        "bn_beta": 0.1 * jax.random.normal(ks[4], (MAX_SCALES, cout), jnp.float32),
        "bn_mean": 0.1 * jax.random.normal(ks[5], (MAX_SCALES, cout), jnp.float32),
        "bn_var": 1.0 + 0.1 * jnp.abs(jax.random.normal(ks[6], (MAX_SCALES, cout), jnp.float32)),
        "lastbn_gamma": 1.0 + 0.1 * jax.random.normal(ks[7], (cout,), jnp.float32),
        "lastbn_beta": 0.1 * jax.random.normal(ks[8], (cout,), jnp.float32),
        "lastbn_mean": 0.1 * jax.random.normal(ks[9], (cout,), jnp.float32),
        "lastbn_var": 1.0 + 0.1 * jnp.abs(jax.random.normal(ks[10], (cout,), jnp.float32)),
    }


if __name__ == "__main__":
    key = jax.random.PRNGKey(0)
    k_x, k_p = jax.random.split(key)

    N, CIN, COUT, H, W = 2, 4, 8, 16, 16
    x = jax.random.normal(k_x, (N, CIN, H, W), jnp.float32)
    params = make_params(k_p, CIN, COUT)

    fwd = jax.jit(sconv2d_forward)
    out = jax.block_until_ready(fwd(x, params))
    ref = jax.block_until_ready(sconv2d_reference(x, params))

    assert out.shape == (N, COUT, H, W), out.shape
    assert bool(jnp.all(jnp.isfinite(out)))
    max_err = float(jnp.max(jnp.abs(out - ref)))
    # The kernel feeds the MXU in bfloat16 (f32 accumulation) and stores the
    # per-scale maps in bfloat16; tolerance covers bf16 rounding of the 36-term
    # dot products + bf16 intermediate storage vs the f32 HIGHEST reference.
    assert bool(jnp.allclose(out, ref, atol=7.5e-2, rtol=5e-2)), max_err

    print("KERNEL_OK")
</pallas_src>

<mosaic_0001>
module attributes {stable_mosaic.version = 11 : i64} {
  func.func @_conv_fused_kernel(%arg0: i32, %arg1: memref<8x36xbf16, #tpu.memory_space<vmem>>, %arg2: memref<36x128xbf16, #tpu.memory_space<vmem>>, %arg3: memref<1x128xf32, #tpu.memory_space<vmem>>, %arg4: memref<8x128xbf16, #tpu.memory_space<vmem>>) attributes {dimension_semantics = [#tpu.dimension_semantics<parallel>], iteration_bounds = array<i64: 1>, scalar_prefetch = 0 : i64, scratch_operands = 0 : i64, tpu.core_type = #tpu.core_type<tc>, window_params = [{transform_indices = @transform_0, window_bounds = array<i64: 8, 36>}, {pipeline_mode = #tpu.pipeline_mode<synchronous>, transform_indices = @transform_1, window_bounds = array<i64: 36, 128>}, {pipeline_mode = #tpu.pipeline_mode<synchronous>, transform_indices = @transform_2, window_bounds = array<i64: 1, 128>}, {transform_indices = @transform_3, window_bounds = array<i64: 8, 128>}]} {
    %c0 = arith.constant 0 : index
    %c0_0 = arith.constant 0 : index
    %0 = vector.load %arg1[%c0, %c0_0] : memref<8x36xbf16, #tpu.memory_space<vmem>>, vector<8x36xbf16>
    %c0_1 = arith.constant 0 : index
    %c0_2 = arith.constant 0 : index
    %1 = vector.load %arg2[%c0_1, %c0_2] : memref<36x128xbf16, #tpu.memory_space<vmem>>, vector<36x128xbf16>
    %cst = arith.constant dense<0.000000e+00> : vector<8x128xf32>
    %2 = tpu.matmul %0, %1, %cst {dimension_numbers = #tpu.dot_dimension_numbers<[1], [0], [0], [1], [0, 0, 1, 1], [], []>} : vector<8x36xbf16>, vector<36x128xbf16>, vector<8x128xf32> -> vector<8x128xf32>
    %c0_3 = arith.constant 0 : index
    %c0_4 = arith.constant 0 : index
    %3 = vector.load %arg3[%c0_3, %c0_4] : memref<1x128xf32, #tpu.memory_space<vmem>>, vector<1x128xf32>
    %4 = vector.broadcast %3 : vector<1x128xf32> to vector<8x128xf32>
    %5 = arith.addf %2, %4 : vector<8x128xf32>
    %cst_5 = arith.constant 0.000000e+00 : f32
    %6 = vector.broadcast %cst_5 : f32 to vector<8x128xf32>
    %7 = arith.maximumf %5, %6 : vector<8x128xf32>
    %8 = arith.truncf %7 : vector<8x128xf32> to vector<8x128xbf16>
    %c0_6 = arith.constant 0 : index
    %c0_7 = arith.constant 0 : index
    %9 = vector.load %arg4[%c0_6, %c0_7] : memref<8x128xbf16, #tpu.memory_space<vmem>>, vector<8x128xbf16>
    tpu.vector_store %arg4[%c0_6, %c0_7], %8 {strides = array<i32>} : memref<8x128xbf16, #tpu.memory_space<vmem>>, vector<8x128xbf16>,
    return
  }
  func.func @transform_0(%arg0: i32) -> (i32, i32) {
    %c0_i32 = arith.constant 0 : i32
    %c0_i32_0 = arith.constant 0 : i32
    return %arg0, %c0_i32 : i32, i32
  }
  func.func @transform_1(%arg0: i32) -> (i32, i32) {
    %c0_i32 = arith.constant 0 : i32
    %c0_i32_0 = arith.constant 0 : i32
    %c0_i32_1 = arith.constant 0 : i32
    return %c0_i32, %c0_i32_0 : i32, i32
  }
  func.func @transform_2(%arg0: i32) -> (i32, i32) {
    %c0_i32 = arith.constant 0 : i32
    %c0_i32_0 = arith.constant 0 : i32
    %c0_i32_1 = arith.constant 0 : i32
    return %c0_i32, %c0_i32_0 : i32, i32
  }
  func.func @transform_3(%arg0: i32) -> (i32, i32) {
    %c0_i32 = arith.constant 0 : i32
    %c0_i32_0 = arith.constant 0 : i32
    return %arg0, %c0_i32 : i32, i32
  }
}

module attributes {stable_mosaic.version = 11 : i64} {
  func.func @_conv_fused_kernel(%arg0: i32, %arg1: memref<32x36xbf16, #tpu.memory_space<vmem>>, %arg2: memref<36x128xbf16, #tpu.memory_space<vmem>>, %arg3: memref<1x128xf32, #tpu.memory_space<vmem>>, %arg4: memref<32x128xbf16, #tpu.memory_space<vmem>>) attributes {dimension_semantics = [#tpu.dimension_semantics<parallel>], iteration_bounds = array<i64: 1>, scalar_prefetch = 0 : i64, scratch_operands = 0 : i64, tpu.core_type = #tpu.core_type<tc>, window_params = [{transform_indices = @transform_0, window_bounds = array<i64: 32, 36>}, {pipeline_mode = #tpu.pipeline_mode<synchronous>, transform_indices = @transform_1, window_bounds = array<i64: 36, 128>}, {pipeline_mode = #tpu.pipeline_mode<synchronous>, transform_indices = @transform_2, window_bounds = array<i64: 1, 128>}, {transform_indices = @transform_3, window_bounds = array<i64: 32, 128>}]} {
    %c0 = arith.constant 0 : index
    %c0_0 = arith.constant 0 : index
    %0 = vector.load %arg1[%c0, %c0_0] : memref<32x36xbf16, #tpu.memory_space<vmem>>, vector<32x36xbf16>
    %c0_1 = arith.constant 0 : index
    %c0_2 = arith.constant 0 : index
    %1 = vector.load %arg2[%c0_1, %c0_2] : memref<36x128xbf16, #tpu.memory_space<vmem>>, vector<36x128xbf16>
    %cst = arith.constant dense<0.000000e+00> : vector<32x128xf32>
    %2 = tpu.matmul %0, %1, %cst {dimension_numbers = #tpu.dot_dimension_numbers<[1], [0], [0], [1], [0, 0, 1, 1], [], []>} : vector<32x36xbf16>, vector<36x128xbf16>, vector<32x128xf32> -> vector<32x128xf32>
    %c0_3 = arith.constant 0 : index
    %c0_4 = arith.constant 0 : index
    %3 = vector.load %arg3[%c0_3, %c0_4] : memref<1x128xf32, #tpu.memory_space<vmem>>, vector<1x128xf32>
    %4 = vector.broadcast %3 : vector<1x128xf32> to vector<32x128xf32>
    %5 = arith.addf %2, %4 : vector<32x128xf32>
    %cst_5 = arith.constant 0.000000e+00 : f32
    %6 = vector.broadcast %cst_5 : f32 to vector<32x128xf32>
    %7 = arith.maximumf %5, %6 : vector<32x128xf32>
    %8 = arith.truncf %7 : vector<32x128xf32> to vector<32x128xbf16>
    %c0_6 = arith.constant 0 : index
    %c0_7 = arith.constant 0 : index
    %9 = vector.load %arg4[%c0_6, %c0_7] : memref<32x128xbf16, #tpu.memory_space<vmem>>, vector<32x128xbf16>
    tpu.vector_store %arg4[%c0_6, %c0_7], %8 {strides = array<i32>} : memref<32x128xbf16, #tpu.memory_space<vmem>>, vector<32x128xbf16>,
    return
  }
  func.func @transform_0(%arg0: i32) -> (i32, i32) {
    %c0_i32 = arith.constant 0 : i32
    %c0_i32_0 = arith.constant 0 : i32
    return %arg0, %c0_i32 : i32, i32
  }
  func.func @transform_1(%arg0: i32) -> (i32, i32) {
    %c0_i32 = arith.constant 0 : i32
    %c0_i32_0 = arith.constant 0 : i32
    %c0_i32_1 = arith.constant 0 : i32
    return %c0_i32, %c0_i32_0 : i32, i32
  }
  func.func @transform_2(%arg0: i32) -> (i32, i32) {
    %c0_i32 = arith.constant 0 : i32
    %c0_i32_0 = arith.constant 0 : i32
    %c0_i32_1 = arith.constant 0 : i32
    return %c0_i32, %c0_i32_0 : i32, i32
  }
  func.func @transform_3(%arg0: i32) -> (i32, i32) {
    %c0_i32 = arith.constant 0 : i32
    %c0_i32_0 = arith.constant 0 : i32
    return %arg0, %c0_i32 : i32, i32
  }
}

module attributes {stable_mosaic.version = 11 : i64} {
  func.func @_conv_fused_kernel(%arg0: i32, %arg1: memref<128x36xbf16, #tpu.memory_space<vmem>>, %arg2: memref<36x128xbf16, #tpu.memory_space<vmem>>, %arg3: memref<1x128xf32, #tpu.memory_space<vmem>>, %arg4: memref<128x128xbf16, #tpu.memory_space<vmem>>) attributes {dimension_semantics = [#tpu.dimension_semantics<parallel>], iteration_bounds = array<i64: 1>, scalar_prefetch = 0 : i64, scratch_operands = 0 : i64, tpu.core_type = #tpu.core_type<tc>, window_params = [{transform_indices = @transform_0, window_bounds = array<i64: 128, 36>}, {pipeline_mode = #tpu.pipeline_mode<synchronous>, transform_indices = @transform_1, window_bounds = array<i64: 36, 128>}, {pipeline_mode = #tpu.pipeline_mode<synchronous>, transform_indices = @transform_2, window_bounds = array<i64: 1, 128>}, {transform_indices = @transform_3, window_bounds = array<i64: 128, 128>}]} {
    %c0 = arith.constant 0 : index
    %c0_0 = arith.constant 0 : index
    %0 = vector.load %arg1[%c0, %c0_0] : memref<128x36xbf16, #tpu.memory_space<vmem>>, vector<128x36xbf16>
    %c0_1 = arith.constant 0 : index
    %c0_2 = arith.constant 0 : index
    %1 = vector.load %arg2[%c0_1, %c0_2] : memref<36x128xbf16, #tpu.memory_space<vmem>>, vector<36x128xbf16>
    %cst = arith.constant dense<0.000000e+00> : vector<128x128xf32>
    %2 = tpu.matmul %0, %1, %cst {dimension_numbers = #tpu.dot_dimension_numbers<[1], [0], [0], [1], [0, 0, 1, 1], [], []>} : vector<128x36xbf16>, vector<36x128xbf16>, vector<128x128xf32> -> vector<128x128xf32>
    %c0_3 = arith.constant 0 : index
    %c0_4 = arith.constant 0 : index
    %3 = vector.load %arg3[%c0_3, %c0_4] : memref<1x128xf32, #tpu.memory_space<vmem>>, vector<1x128xf32>
    %4 = vector.broadcast %3 : vector<1x128xf32> to vector<128x128xf32>
    %5 = arith.addf %2, %4 : vector<128x128xf32>
    %cst_5 = arith.constant 0.000000e+00 : f32
    %6 = vector.broadcast %cst_5 : f32 to vector<128x128xf32>
    %7 = arith.maximumf %5, %6 : vector<128x128xf32>
    %8 = arith.truncf %7 : vector<128x128xf32> to vector<128x128xbf16>
    %c0_6 = arith.constant 0 : index
    %c0_7 = arith.constant 0 : index
    %9 = vector.load %arg4[%c0_6, %c0_7] : memref<128x128xbf16, #tpu.memory_space<vmem>>, vector<128x128xbf16>
    tpu.vector_store %arg4[%c0_6, %c0_7], %8 {strides = array<i32>} : memref<128x128xbf16, #tpu.memory_space<vmem>>, vector<128x128xbf16>,
    return
  }
  func.func @transform_0(%arg0: i32) -> (i32, i32) {
    %c0_i32 = arith.constant 0 : i32
    %c0_i32_0 = arith.constant 0 : i32
    return %arg0, %c0_i32 : i32, i32
  }
  func.func @transform_1(%arg0: i32) -> (i32, i32) {
    %c0_i32 = arith.constant 0 : i32
    %c0_i32_0 = arith.constant 0 : i32
    %c0_i32_1 = arith.constant 0 : i32
    return %c0_i32, %c0_i32_0 : i32, i32
  }
  func.func @transform_2(%arg0: i32) -> (i32, i32) {
    %c0_i32 = arith.constant 0 : i32
    %c0_i32_0 = arith.constant 0 : i32
    %c0_i32_1 = arith.constant 0 : i32
    return %c0_i32, %c0_i32_0 : i32, i32
  }
  func.func @transform_3(%arg0: i32) -> (i32, i32) {
    %c0_i32 = arith.constant 0 : i32
    %c0_i32_0 = arith.constant 0 : i32
    return %arg0, %c0_i32 : i32, i32
  }
}

module attributes {stable_mosaic.version = 11 : i64} {
  func.func @_conv_fused_kernel(%arg0: i32, %arg1: memref<512x36xbf16, #tpu.memory_space<vmem>>, %arg2: memref<36x128xbf16, #tpu.memory_space<vmem>>, %arg3: memref<1x128xf32, #tpu.memory_space<vmem>>, %arg4: memref<512x128xbf16, #tpu.memory_space<vmem>>) attributes {dimension_semantics = [#tpu.dimension_semantics<parallel>], iteration_bounds = array<i64: 1>, scalar_prefetch = 0 : i64, scratch_operands = 0 : i64, tpu.core_type = #tpu.core_type<tc>, window_params = [{transform_indices = @transform_0, window_bounds = array<i64: 512, 36>}, {pipeline_mode = #tpu.pipeline_mode<synchronous>, transform_indices = @transform_1, window_bounds = array<i64: 36, 128>}, {pipeline_mode = #tpu.pipeline_mode<synchronous>, transform_indices = @transform_2, window_bounds = array<i64: 1, 128>}, {transform_indices = @transform_3, window_bounds = array<i64: 512, 128>}]} {
    %c0 = arith.constant 0 : index
    %c0_0 = arith.constant 0 : index
    %0 = vector.load %arg1[%c0, %c0_0] : memref<512x36xbf16, #tpu.memory_space<vmem>>, vector<512x36xbf16>
    %c0_1 = arith.constant 0 : index
    %c0_2 = arith.constant 0 : index
    %1 = vector.load %arg2[%c0_1, %c0_2] : memref<36x128xbf16, #tpu.memory_space<vmem>>, vector<36x128xbf16>
    %cst = arith.constant dense<0.000000e+00> : vector<512x128xf32>
    %2 = tpu.matmul %0, %1, %cst {dimension_numbers = #tpu.dot_dimension_numbers<[1], [0], [0], [1], [0, 0, 1, 1], [], []>} : vector<512x36xbf16>, vector<36x128xbf16>, vector<512x128xf32> -> vector<512x128xf32>
    %c0_3 = arith.constant 0 : index
    %c0_4 = arith.constant 0 : index
    %3 = vector.load %arg3[%c0_3, %c0_4] : memref<1x128xf32, #tpu.memory_space<vmem>>, vector<1x128xf32>
    %4 = vector.broadcast %3 : vector<1x128xf32> to vector<512x128xf32>
    %5 = arith.addf %2, %4 : vector<512x128xf32>
    %cst_5 = arith.constant 0.000000e+00 : f32
    %6 = vector.broadcast %cst_5 : f32 to vector<512x128xf32>
    %7 = arith.maximumf %5, %6 : vector<512x128xf32>
    %8 = arith.truncf %7 : vector<512x128xf32> to vector<512x128xbf16>
    %c0_6 = arith.constant 0 : index
    %c0_7 = arith.constant 0 : index
    %9 = vector.load %arg4[%c0_6, %c0_7] : memref<512x128xbf16, #tpu.memory_space<vmem>>, vector<512x128xbf16>
    tpu.vector_store %arg4[%c0_6, %c0_7], %8 {strides = array<i32>} : memref<512x128xbf16, #tpu.memory_space<vmem>>, vector<512x128xbf16>,
    return
  }
  func.func @transform_0(%arg0: i32) -> (i32, i32) {
    %c0_i32 = arith.constant 0 : i32
    %c0_i32_0 = arith.constant 0 : i32
    return %arg0, %c0_i32 : i32, i32
  }
  func.func @transform_1(%arg0: i32) -> (i32, i32) {
    %c0_i32 = arith.constant 0 : i32
    %c0_i32_0 = arith.constant 0 : i32
    %c0_i32_1 = arith.constant 0 : i32
    return %c0_i32, %c0_i32_0 : i32, i32
  }
  func.func @transform_2(%arg0: i32) -> (i32, i32) {
    %c0_i32 = arith.constant 0 : i32
    %c0_i32_0 = arith.constant 0 : i32
    %c0_i32_1 = arith.constant 0 : i32
    return %c0_i32, %c0_i32_0 : i32, i32
  }
  func.func @transform_3(%arg0: i32) -> (i32, i32) {
    %c0_i32 = arith.constant 0 : i32
    %c0_i32_0 = arith.constant 0 : i32
    return %arg0, %c0_i32 : i32, i32
  }
}

module attributes {stable_mosaic.version = 11 : i64} {
  func.func @_combine_bn_kernel(%arg0: i32, %arg1: i32, %arg2: memref<1x16x16x128xbf16, #tpu.memory_space<vmem>>, %arg3: memref<1x8x16x128xbf16, #tpu.memory_space<vmem>>, %arg4: memref<1x4x16x128xbf16, #tpu.memory_space<vmem>>, %arg5: memref<1x2x16x128xbf16, #tpu.memory_space<vmem>>, %arg6: memref<1x1x128xf32, #tpu.memory_space<vmem>>, %arg7: memref<1x1x128xf32, #tpu.memory_space<vmem>>, %arg8: memref<1x16x16x128xf32, #tpu.memory_space<vmem>>) attributes {dimension_semantics = [#tpu.dimension_semantics<parallel>, #tpu.dimension_semantics<parallel>], iteration_bounds = array<i64: 2, 1>, scalar_prefetch = 0 : i64, scratch_operands = 0 : i64, tpu.core_type = #tpu.core_type<tc>, window_params = [{transform_indices = @transform_0, window_bounds = array<i64: 1, 16, 16, 128>}, {transform_indices = @transform_1, window_bounds = array<i64: 1, 8, 16, 128>}, {transform_indices = @transform_2, window_bounds = array<i64: 1, 4, 16, 128>}, {transform_indices = @transform_3, window_bounds = array<i64: 1, 2, 16, 128>}, {pipeline_mode = #tpu.pipeline_mode<synchronous>, transform_indices = @transform_4, window_bounds = array<i64: 1, 1, 128>}, {pipeline_mode = #tpu.pipeline_mode<synchronous>, transform_indices = @transform_5, window_bounds = array<i64: 1, 1, 128>}, {transform_indices = @transform_6, window_bounds = array<i64: 1, 16, 16, 128>}]} {
    %c0 = arith.constant 0 : index
    %c0_0 = arith.constant 0 : index
    %c0_1 = arith.constant 0 : index
    %c0_2 = arith.constant 0 : index
    %0 = vector.load %arg2[%c0, %c0_0, %c0_1, %c0_2] : memref<1x16x16x128xbf16, #tpu.memory_space<vmem>>, vector<1x16x16x128xbf16>
    %1 = vector.shape_cast %0 : vector<1x16x16x128xbf16> to vector<16x16x128xbf16>
    %2 = arith.extf %1 : vector<16x16x128xbf16> to vector<16x16x128xf32>
    %c0_3 = arith.constant 0 : index
    %c0_4 = arith.constant 0 : index
    %c0_5 = arith.constant 0 : index
    %c0_6 = arith.constant 0 : index
    %3 = vector.load %arg3[%c0_3, %c0_4, %c0_5, %c0_6] : memref<1x8x16x128xbf16, #tpu.memory_space<vmem>>, vector<1x8x16x128xbf16>
    %4 = vector.shape_cast %3 : vector<1x8x16x128xbf16> to vector<8x16x128xbf16>
    %5 = arith.extf %4 : vector<8x16x128xbf16> to vector<8x16x128xf32>
    %6 = vector.shape_cast %5 : vector<8x16x128xf32> to vector<8x1x16x128xf32>
    %7 = vector.shape_cast %6 : vector<8x1x16x128xf32> to vector<8x1x16x128xf32>
    %8 = vector.broadcast %7 : vector<8x1x16x128xf32> to vector<8x2x16x128xf32>
    %9 = vector.shape_cast %8 : vector<8x2x16x128xf32> to vector<16x16x128xf32>
    %10 = arith.addf %2, %9 : vector<16x16x128xf32>
    %c0_7 = arith.constant 0 : index
    %c0_8 = arith.constant 0 : index
    %c0_9 = arith.constant 0 : index
    %c0_10 = arith.constant 0 : index
    %11 = vector.load %arg4[%c0_7, %c0_8, %c0_9, %c0_10] : memref<1x4x16x128xbf16, #tpu.memory_space<vmem>>, vector<1x4x16x128xbf16>
    %12 = vector.shape_cast %11 : vector<1x4x16x128xbf16> to vector<4x16x128xbf16>
    %13 = arith.extf %12 : vector<4x16x128xbf16> to vector<4x16x128xf32>
    %14 = vector.shape_cast %13 : vector<4x16x128xf32> to vector<4x1x16x128xf32>
    %15 = vector.shape_cast %14 : vector<4x1x16x128xf32> to vector<4x1x16x128xf32>
    %16 = vector.broadcast %15 : vector<4x1x16x128xf32> to vector<4x4x16x128xf32>
    %17 = vector.shape_cast %16 : vector<4x4x16x128xf32> to vector<16x16x128xf32>
    %18 = arith.addf %10, %17 : vector<16x16x128xf32>
    %c0_11 = arith.constant 0 : index
    %c0_12 = arith.constant 0 : index
    %c0_13 = arith.constant 0 : index
    %c0_14 = arith.constant 0 : index
    %19 = vector.load %arg5[%c0_11, %c0_12, %c0_13, %c0_14] : memref<1x2x16x128xbf16, #tpu.memory_space<vmem>>, vector<1x2x16x128xbf16>
    %20 = vector.shape_cast %19 : vector<1x2x16x128xbf16> to vector<2x16x128xbf16>
    %21 = arith.extf %20 : vector<2x16x128xbf16> to vector<2x16x128xf32>
    %22 = vector.shape_cast %21 : vector<2x16x128xf32> to vector<2x1x16x128xf32>
    %23 = vector.shape_cast %22 : vector<2x1x16x128xf32> to vector<2x1x16x128xf32>
    %24 = vector.broadcast %23 : vector<2x1x16x128xf32> to vector<2x8x16x128xf32>
    %25 = vector.shape_cast %24 : vector<2x8x16x128xf32> to vector<16x16x128xf32>
    %26 = arith.addf %18, %25 : vector<16x16x128xf32>
    %c0_15 = arith.constant 0 : index
    %c0_16 = arith.constant 0 : index
    %c0_17 = arith.constant 0 : index
    %27 = vector.load %arg6[%c0_15, %c0_16, %c0_17] : memref<1x1x128xf32, #tpu.memory_space<vmem>>, vector<1x1x128xf32>
    %28 = vector.shape_cast %27 : vector<1x1x128xf32> to vector<1x128xf32>
    %29 = vector.shape_cast %28 : vector<1x128xf32> to vector<1x1x128xf32>
    %30 = vector.broadcast %29 : vector<1x1x128xf32> to vector<16x16x128xf32>
    %31 = arith.mulf %26, %30 : vector<16x16x128xf32>
    %c0_18 = arith.constant 0 : index
    %c0_19 = arith.constant 0 : index
    %c0_20 = arith.constant 0 : index
    %32 = vector.load %arg7[%c0_18, %c0_19, %c0_20] : memref<1x1x128xf32, #tpu.memory_space<vmem>>, vector<1x1x128xf32>
    %33 = vector.shape_cast %32 : vector<1x1x128xf32> to vector<1x128xf32>
    %34 = vector.shape_cast %33 : vector<1x128xf32> to vector<1x1x128xf32>
    %35 = vector.broadcast %34 : vector<1x1x128xf32> to vector<16x16x128xf32>
    %36 = arith.addf %31, %35 : vector<16x16x128xf32>
    %c0_21 = arith.constant 0 : index
    %c0_22 = arith.constant 0 : index
    %c0_23 = arith.constant 0 : index
    %c0_24 = arith.constant 0 : index
    %37 = vector.load %arg8[%c0_21, %c0_22, %c0_23, %c0_24] : memref<1x16x16x128xf32, #tpu.memory_space<vmem>>, vector<1x16x16x128xf32>
    %38 = vector.shape_cast %37 : vector<1x16x16x128xf32> to vector<16x16x128xf32>
    %39 = vector.shape_cast %36 : vector<16x16x128xf32> to vector<1x16x16x128xf32>
    tpu.vector_store %arg8[%c0_21, %c0_22, %c0_23, %c0_24], %39 {strides = array<i32>} : memref<1x16x16x128xf32, #tpu.memory_space<vmem>>, vector<1x16x16x128xf32>,
    return
  }
  func.func @transform_0(%arg0: i32, %arg1: i32) -> (i32, i32, i32, i32) {
    %c0_i32 = arith.constant 0 : i32
    %c0_i32_0 = arith.constant 0 : i32
    %c0_i32_1 = arith.constant 0 : i32
    return %arg0, %arg1, %c0_i32, %c0_i32_0 : i32, i32, i32, i32
  }
  func.func @transform_1(%arg0: i32, %arg1: i32) -> (i32, i32, i32, i32) {
    %c0_i32 = arith.constant 0 : i32
    %c0_i32_0 = arith.constant 0 : i32
    %c0_i32_1 = arith.constant 0 : i32
    return %arg0, %arg1, %c0_i32, %c0_i32_0 : i32, i32, i32, i32
  }
  func.func @transform_2(%arg0: i32, %arg1: i32) -> (i32, i32, i32, i32) {
    %c0_i32 = arith.constant 0 : i32
    %c0_i32_0 = arith.constant 0 : i32
    %c0_i32_1 = arith.constant 0 : i32
    return %arg0, %arg1, %c0_i32, %c0_i32_0 : i32, i32, i32, i32
  }
  func.func @transform_3(%arg0: i32, %arg1: i32) -> (i32, i32, i32, i32) {
    %c0_i32 = arith.constant 0 : i32
    %c0_i32_0 = arith.constant 0 : i32
    %c0_i32_1 = arith.constant 0 : i32
    return %arg0, %arg1, %c0_i32, %c0_i32_0 : i32, i32, i32, i32
  }
  func.func @transform_4(%arg0: i32, %arg1: i32) -> (i32, i32, i32) {
    %c0_i32 = arith.constant 0 : i32
    %c0_i32_0 = arith.constant 0 : i32
    %c0_i32_1 = arith.constant 0 : i32
    %c0_i32_2 = arith.constant 0 : i32
    return %c0_i32, %c0_i32_0, %c0_i32_1 : i32, i32, i32
  }
  func.func @transform_5(%arg0: i32, %arg1: i32) -> (i32, i32, i32) {
    %c0_i32 = arith.constant 0 : i32
    %c0_i32_0 = arith.constant 0 : i32
    %c0_i32_1 = arith.constant 0 : i32
    %c0_i32_2 = arith.constant 0 : i32
    return %c0_i32, %c0_i32_0, %c0_i32_1 : i32, i32, i32
  }
  func.func @transform_6(%arg0: i32, %arg1: i32) -> (i32, i32, i32, i32) {
    %c0_i32 = arith.constant 0 : i32
    %c0_i32_0 = arith.constant 0 : i32
    %c0_i32_1 = arith.constant 0 : i32
    return %arg0, %arg1, %c0_i32, %c0_i32_0 : i32, i32, i32, i32
  }
}

</mosaic_0001>

<llo_original>
// kernel: reverse
$region0: #{reverse}
  #allocation0 [shape = 's32[1]{0}', space=sflag, size = 0x4, scoped, tag = 'scoped memory for reverse']
  %s0 = inlined_call_operand.vmem [shape: bf16[36,4,3,3], index: 0, kind: input, shape index: {}]
  %s1 = inlined_call_operand.vmem [shape: bf16[36,4,3,3], index: 1, kind: output, shape index: {}]
  %s2 = scalar_lea.vmem %s0, 16
  %s4 = sor.u32 15, 7
  %s5 = sand.u32 %s4, 5
  %s6 = sshrl.u32 %s5, 1
  %s7 = sor.u32 %s5, %s6
  %s8 = sand.u32 3, %s7
  %v9 = vld [vmem:[%s2] sm:%s8]
  %v10 = vunpack.c.l.bf16 %v9
  %v11 = vunpack.c.h.bf16 %v9
  %v12 = vpack.c.bf16 0.0, %v10
  %13 = vst [vmem:[%s1] sm:$0x3] %v12
  %s14 = scalar_lea.vmem %s0, 10
  %s16 = sor.u32 15, 7
  %s17 = sand.u32 %s16, 5
  %s18 = sshrl.u32 %s17, 1
  %s19 = sor.u32 %s17, %s18
  %s20 = sand.u32 3, %s19
  %v21 = vld [vmem:[%s14] sm:%s20]
  %v22 = vunpack.c.l.bf16 %v21
  %v23 = vunpack.c.h.bf16 %v21
  %s24 = scalar_lea.vmem %s1, 6
  %v25 = vpack.c.bf16 0.0, %v22
  %26 = vst [vmem:[%s24] sm:$0x3] %v25
  %s27 = scalar_lea.vmem %s0, 4
  %s29 = sor.u32 15, 7
  %s30 = sand.u32 %s29, 5
  %s31 = sshrl.u32 %s30, 1
  %s32 = sor.u32 %s30, %s31
  %s33 = sand.u32 3, %s32
  %v34 = vld [vmem:[%s27] sm:%s33]
  %v35 = vunpack.c.l.bf16 %v34
  %v36 = vunpack.c.h.bf16 %v34
  %s37 = scalar_lea.vmem %s1, 12
  %v38 = vpack.c.bf16 0.0, %v35
  %39 = vst [vmem:[%s37] sm:$0x3] %v38
  %s40 = scalar_lea.vmem %s0, 14
  %s42 = sor.u32 15, 7
  %s43 = sand.u32 %s42, 5
  %s44 = sshrl.u32 %s43, 1
  %s45 = sor.u32 %s43, %s44
  %s46 = sand.u32 3, %s45
  %v47 = vld [vmem:[%s40] sm:%s46]
  %v48 = vunpack.c.l.bf16 %v47
  %v49 = vunpack.c.h.bf16 %v47
  %s50 = scalar_lea.vmem %s1, 2
  %v51 = vpack.c.bf16 0.0, %v48
  %52 = vst [vmem:[%s50] sm:$0x3] %v51
  %s53 = scalar_lea.vmem %s0, 8
  %s55 = sor.u32 15, 7
  %s56 = sand.u32 %s55, 5
  %s57 = sshrl.u32 %s56, 1
  %s58 = sor.u32 %s56, %s57
  %s59 = sand.u32 3, %s58
  %v60 = vld [vmem:[%s53] sm:%s59]
  %v61 = vunpack.c.l.bf16 %v60
  %v62 = vunpack.c.h.bf16 %v60
  %s63 = scalar_lea.vmem %s1, 8
  %v64 = vpack.c.bf16 0.0, %v61
  %65 = vst [vmem:[%s63] sm:$0x3] %v64
  %s66 = scalar_lea.vmem %s0, 2
  %s68 = sor.u32 15, 7
  %s69 = sand.u32 %s68, 5
  %s70 = sshrl.u32 %s69, 1
  %s71 = sor.u32 %s69, %s70
  %s72 = sand.u32 3, %s71
  %v73 = vld [vmem:[%s66] sm:%s72]
  %v74 = vunpack.c.l.bf16 %v73
  %v75 = vunpack.c.h.bf16 %v73
  %s76 = scalar_lea.vmem %s1, 14
  %v77 = vpack.c.bf16 0.0, %v74
  %78 = vst [vmem:[%s76] sm:$0x3] %v77
  %s79 = scalar_lea.vmem %s0, 12
  %s81 = sor.u32 15, 7
  %s82 = sand.u32 %s81, 5
  %s83 = sshrl.u32 %s82, 1
  %s84 = sor.u32 %s82, %s83
  %s85 = sand.u32 3, %s84
  %v86 = vld [vmem:[%s79] sm:%s85]
  %v87 = vunpack.c.l.bf16 %v86
  %v88 = vunpack.c.h.bf16 %v86
  %s89 = scalar_lea.vmem %s1, 4
  %v90 = vpack.c.bf16 0.0, %v87
  %91 = vst [vmem:[%s89] sm:$0x3] %v90
  %s92 = scalar_lea.vmem %s0, 6
  %s94 = sor.u32 15, 7
  %s95 = sand.u32 %s94, 5
  %s96 = sshrl.u32 %s95, 1
  %s97 = sor.u32 %s95, %s96
  %s98 = sand.u32 3, %s97
  %v99 = vld [vmem:[%s92] sm:%s98]
  %v100 = vunpack.c.l.bf16 %v99
  %v101 = vunpack.c.h.bf16 %v99
  %s102 = scalar_lea.vmem %s1, 10
  %v103 = vpack.c.bf16 0.0, %v100
  %104 = vst [vmem:[%s102] sm:$0x3] %v103
  %s106 = sor.u32 15, 7
  %s107 = sand.u32 %s106, 5
  %s108 = sshrl.u32 %s107, 1
  %s109 = sor.u32 %s107, %s108
  %s110 = sand.u32 3, %s109
  %v111 = vld [vmem:[%s0] sm:%s110]
  %v112 = vunpack.c.l.bf16 %v111
  %v113 = vunpack.c.h.bf16 %v111
  %s114 = scalar_lea.vmem %s1, 16
  %v115 = vpack.c.bf16 0.0, %v112
  %116 = vst [vmem:[%s114] sm:$0x3] %v115

// kernel: sconv2d_forward.8
$region0: #{sconv2d_forward.8}
  #allocation0 [shape = 'u32[]', space=smem, size = 0x4, offset = 0x4, fixed_abs, tag = 'smem constant byte address 0x4 - core index']
  #allocation1 [shape = 'u32[144,128]{1,0:T(1,128)}', space=vmem, size = 0x12000, scoped, tag = 'internal scratch']
  %s0 = inlined_call_operand.vmem [shape: bf16[8,36], index: 0, kind: input, shape index: {}]
  %s1 = inlined_call_operand.vmem [shape: bf16[36,128], index: 1, kind: input, shape index: {}]
  %s2 = inlined_call_operand.vmem [shape: f32[1,128], index: 2, kind: input, shape index: {}]
  %s3 = inlined_call_operand.vmem [shape: bf16[8,128], index: 3, kind: output, shape index: {}]
  %s4 = sld [smem:[#allocation0]]
  $region22: #{sconv2d_forward.8} parent=0
    _
  %s6 = ssub.s32 1, %s4
  %s7 = scalar_select 0, %s6, %s4
  // Predicated region
  $region2: #{sconv2d_forward.8} parent=0 // pred_check
    _
  $region3: #{sconv2d_forward.8} parent=0 // pred_check_branch
    %9 = sbr.rel (0) target = $region5
  $region4: #{sconv2d_forward.8} parent=0 // pred_region
    _
  $region5: #{sconv2d_forward.8} parent=0 // pred_fallthru
    _
  // Predicated region
  $region6: #{sconv2d_forward.8} parent=0 // pred_check
    _
  $region7: #{sconv2d_forward.8} parent=0 // pred_check_branch
    %11 = sbr.rel (0) target = $region9
  $region8: #{sconv2d_forward.8} parent=0 // pred_region
    _
  $region9: #{sconv2d_forward.8} parent=0 // pred_fallthru
    _
  // Predicated region
  $region10: #{sconv2d_forward.8} parent=0 // pred_check
    _
  $region11: #{sconv2d_forward.8} parent=0 // pred_check_branch
    %13 = sbr.rel (0) target = $region13
  $region12: #{sconv2d_forward.8} parent=0 // pred_region
    _
  $region13: #{sconv2d_forward.8} parent=0 // pred_fallthru
    _
  %v15 = vld [vmem:[%s0] sm:$0xf]
  %v16 = vld [vmem:[%s1] sm:$0xf]
  %v17 = vld [vmem:[%s1 + $0x4] sm:$0xf]
  %v18 = vld [vmem:[%s1 + $0x8] sm:$0xf]
  %v19 = vld [vmem:[%s1 + $0xc] sm:$0xf]
  %v20 = vld [vmem:[%s1 + $0x10] sm:$0x3]
  %v21 = vld [vmem:[%s2] sm:$0x1]
  %v23 = vlaneseq
  %v24 = vshrl.u32 %v23, 7
  %v25 = vsub.s32 0, %v24
  %v26 = vrot.slane %v21, %v25
  %v33 = vunpack.c.l.b16 %v16
  %v34 = vunpack.c.l.b16 %v17
  %v35 = vunpack.c.l.b16 %v18
  %v36 = vunpack.c.l.b16 %v19
  %v37 = vunpack.c.l.b16 %v20
  %v38 = vpack.c.b16 %v34, %v33
  %v39 = vpack.c.b16 %v36, %v35
  %v40 = vpack.c.b16 %v37, %v37
  %vm43 = vcmask 293888
  %v45 = vsel %vm43, %v15, 0
  %vm47 = vcmask 1041408
  %v49 = vsel %vm47, %v40, 0
  %51 = vmatprep.subr.bf16.mxu0 0
  %52 = vmatpush1.bf16.msra.mxu0 %v38
  %53 = vmatprep.subr.bf16.mxu0 0
  %54 = vmatpush1.bf16.msra.mxu0 %v39
  %55 = vmatprep.subr.bf16.mxu0 0
  %56 = vmatpush1.bf16.msra.mxu0 %v49
  %57 = vmatprep.subr.bf16.mxu0 0
  %58 = vmatpush1.bf16.msra.mxu0 0
  %59 = vmatprep.subr.bf16.mxu0 0
  %60 = vmatpush1.bf16.msra.mxu0 0
  %61 = vmatprep.subr.bf16.mxu0 0
  %62 = vmatpush1.bf16.msra.mxu0 0
  %63 = vmatprep.subr.bf16.mxu0 0
  %64 = vmatpush1.bf16.msra.mxu0 0
  %65 = vmatprep.subr.bf16.mxu0 0
  %66 = vmatpush1.bf16.msra.mxu0 0
  %67 = vmatprep.subr.bf16.mxu0 0
  %68 = vmatpush1.bf16.msra.mxu0 0
  %69 = vmatprep.subr.bf16.mxu0 0
  %70 = vmatpush1.bf16.msra.mxu0 0
  %71 = vmatprep.subr.bf16.mxu0 0
  %72 = vmatpush1.bf16.msra.mxu0 0
  %73 = vmatprep.subr.bf16.mxu0 0
  %74 = vmatpush1.bf16.msra.mxu0 0
  %75 = vmatprep.subr.bf16.mxu0 0
  %76 = vmatpush1.bf16.msra.mxu0 0
  %77 = vmatprep.subr.bf16.mxu0 0
  %78 = vmatpush1.bf16.msra.mxu0 0
  %79 = vmatprep.subr.bf16.mxu0 0
  %80 = vmatpush1.bf16.msra.mxu0 0
  %81 = vmatprep.subr.bf16.mxu0 0
  %82 = vmatpush1.bf16.msra.mxu0 0
  %83 = vmatprep.mubr.bf16.mxu0 0
  %84 = vmatmul.mubr.bf16.gmra.mrb[0].mxu0 %v45
  %v85 = vpop.f32.mrb[0].mxu0
  %v86 = vadd.f32 %v26, %v85
  %v87 = vpop.f32.mrb[0].mxu0
  %v88 = vpop.f32.mrb[0].mxu0
  %v89 = vpop.f32.mrb[0].mxu0
  %90 = vdwg.mxu0
  %v91 = vmax.f32 %v86, 0.0
  %v92 = vpack.c.bf16 %v91, %v91
  %93 = vst [vmem:[%s3] sm:$0xf] %v92
  // Predicated region
  $region14: #{sconv2d_forward.8} parent=0 // pred_check
    _
  $region15: #{sconv2d_forward.8} parent=0 // pred_check_branch
    %95 = sbr.rel (0) target = $region17
  $region16: #{sconv2d_forward.8} parent=0 // pred_region
    _
  $region17: #{sconv2d_forward.8} parent=0 // pred_fallthru
    _
  // Predicated region
  $region18: #{sconv2d_forward.8} parent=0 // pred_check
    _
  $region19: #{sconv2d_forward.8} parent=0 // pred_check_branch
    %97 = sbr.rel (0) target = $region21
  $region20: #{sconv2d_forward.8} parent=0 // pred_region
    _
  $region21: #{sconv2d_forward.8} parent=0 // pred_fallthru
    _

// kernel: sconv2d_forward.7
$region0: #{sconv2d_forward.7}
  #allocation0 [shape = 'u32[]', space=smem, size = 0x4, offset = 0x4, fixed_abs, tag = 'smem constant byte address 0x4 - core index']
  #allocation1 [shape = 'u32[144,128]{1,0:T(1,128)}', space=vmem, size = 0x12000, scoped, tag = 'internal scratch']
  %s0 = inlined_call_operand.vmem [shape: bf16[32,36], index: 0, kind: input, shape index: {}]
  %s1 = inlined_call_operand.vmem [shape: bf16[36,128], index: 1, kind: input, shape index: {}]
  %s2 = inlined_call_operand.vmem [shape: f32[1,128], index: 2, kind: input, shape index: {}]
  %s3 = inlined_call_operand.vmem [shape: bf16[32,128], index: 3, kind: output, shape index: {}]
  %s4 = sld [smem:[#allocation0]]
  $region22: #{sconv2d_forward.7} parent=0
    _
  %s6 = ssub.s32 1, %s4
  %s7 = scalar_select 0, %s6, %s4
  // Predicated region
  $region2: #{sconv2d_forward.7} parent=0 // pred_check
    _
  $region3: #{sconv2d_forward.7} parent=0 // pred_check_branch
    %9 = sbr.rel (0) target = $region5
  $region4: #{sconv2d_forward.7} parent=0 // pred_region
    _
  $region5: #{sconv2d_forward.7} parent=0 // pred_fallthru
    _
  // Predicated region
  $region6: #{sconv2d_forward.7} parent=0 // pred_check
    _
  $region7: #{sconv2d_forward.7} parent=0 // pred_check_branch
    %11 = sbr.rel (0) target = $region9
  $region8: #{sconv2d_forward.7} parent=0 // pred_region
    _
  $region9: #{sconv2d_forward.7} parent=0 // pred_fallthru
    _
  // Predicated region
  $region10: #{sconv2d_forward.7} parent=0 // pred_check
    _
  $region11: #{sconv2d_forward.7} parent=0 // pred_check_branch
    %13 = sbr.rel (0) target = $region13
  $region12: #{sconv2d_forward.7} parent=0 // pred_region
    _
  $region13: #{sconv2d_forward.7} parent=0 // pred_fallthru
    _
  %v15 = vld [vmem:[%s0] sm:$0xf]
  %v16 = vld [vmem:[%s0 + $0x4] sm:$0xf]
  %v17 = vld [vmem:[%s0 + $0x8] sm:$0xf]
  %v18 = vld [vmem:[%s0 + $0xc] sm:$0xf]
  %v19 = vld [vmem:[%s1] sm:$0xf]
  %v20 = vld [vmem:[%s1 + $0x4] sm:$0xf]
  %v21 = vld [vmem:[%s1 + $0x8] sm:$0xf]
  %v22 = vld [vmem:[%s1 + $0xc] sm:$0xf]
  %v23 = vld [vmem:[%s1 + $0x10] sm:$0x3]
  %v24 = vld [vmem:[%s2] sm:$0x1]
  %v26 = vlaneseq
  %v27 = vshrl.u32 %v26, 7
  %v28 = vsub.s32 0, %v27
  %v29 = vrot.slane %v24, %v28
  %v35 = vunpack.c.l.b16 %v15
  %v36 = vunpack.c.l.b16 %v16
  %v37 = vunpack.c.l.b16 %v17
  %v38 = vunpack.c.l.b16 %v18
  %v39 = vpack.c.b16 %v36, %v35
  %v40 = vpack.c.b16 %v38, %v37
  %v46 = vunpack.c.l.b16 %v19
  %v47 = vunpack.c.l.b16 %v20
  %v48 = vunpack.c.l.b16 %v21
  %v49 = vunpack.c.l.b16 %v22
  %v50 = vunpack.c.l.b16 %v23
  %v51 = vpack.c.b16 %v47, %v46
  %v52 = vpack.c.b16 %v49, %v48
  %v53 = vpack.c.b16 %v50, %v50
  %vm56 = vcmask 293888
  %v58 = vsel %vm56, %v39, 0
  %v61 = vsel %vm56, %v40, 0
  %vm63 = vcmask 1041408
  %v65 = vsel %vm63, %v53, 0
  %67 = vmatprep.subr.bf16.mxu0 0
  %68 = vmatpush1.bf16.msra.mxu0 %v51
  %69 = vmatprep.subr.bf16.mxu0 0
  %70 = vmatpush1.bf16.msra.mxu0 %v52
  %71 = vmatprep.subr.bf16.mxu0 0
  %72 = vmatpush1.bf16.msra.mxu0 %v65
  %73 = vmatprep.subr.bf16.mxu0 0
  %74 = vmatpush1.bf16.msra.mxu0 0
  %75 = vmatprep.subr.bf16.mxu0 0
  %76 = vmatpush1.bf16.msra.mxu0 0
  %77 = vmatprep.subr.bf16.mxu0 0
  %78 = vmatpush1.bf16.msra.mxu0 0
  %79 = vmatprep.subr.bf16.mxu0 0
  %80 = vmatpush1.bf16.msra.mxu0 0
  %81 = vmatprep.subr.bf16.mxu0 0
  %82 = vmatpush1.bf16.msra.mxu0 0
  %83 = vmatprep.subr.bf16.mxu0 0
  %84 = vmatpush1.bf16.msra.mxu0 0
  %85 = vmatprep.subr.bf16.mxu0 0
  %86 = vmatpush1.bf16.msra.mxu0 0
  %87 = vmatprep.subr.bf16.mxu0 0
  %88 = vmatpush1.bf16.msra.mxu0 0
  %89 = vmatprep.subr.bf16.mxu0 0
  %90 = vmatpush1.bf16.msra.mxu0 0
  %91 = vmatprep.subr.bf16.mxu0 0
  %92 = vmatpush1.bf16.msra.mxu0 0
  %93 = vmatprep.subr.bf16.mxu0 0
  %94 = vmatpush1.bf16.msra.mxu0 0
  %95 = vmatprep.subr.bf16.mxu0 0
  %96 = vmatpush1.bf16.msra.mxu0 0
  %97 = vmatprep.subr.bf16.mxu0 0
  %98 = vmatpush1.bf16.msra.mxu0 0
  %99 = vmatprep.mubr.bf16.mxu0 0
  %100 = vmatmul.mubr.bf16.gmra.mrb[0].mxu0 %v58
  %v101 = vpop.f32.mrb[0].mxu0
  %v102 = vadd.f32 %v29, %v101
  %v103 = vpop.f32.mrb[0].mxu0
  %v104 = vpop.f32.mrb[0].mxu0
  %v105 = vadd.f32 %v29, %v104
  %v106 = vpop.f32.mrb[0].mxu0
  %107 = vmatprep.mubr.bf16.mxu0 0
  %108 = vmatmul.mubr.bf16.gmra.mrb[0].mxu0 %v61
  %v109 = vpop.f32.mrb[0].mxu0
  %v110 = vadd.f32 %v29, %v109
  %v111 = vpop.f32.mrb[0].mxu0
  %v112 = vpop.f32.mrb[0].mxu0
  %v113 = vadd.f32 %v29, %v112
  %v114 = vpop.f32.mrb[0].mxu0
  %115 = vdwg.mxu0
  %v116 = vmax.f32 %v102, 0.0
  %v117 = vmax.f32 %v105, 0.0
  %v118 = vmax.f32 %v110, 0.0
  %v119 = vmax.f32 %v113, 0.0
  %v120 = vpack.c.bf16 %v117, %v116
  %v121 = vpack.c.bf16 %v119, %v118
  %v124 = vunpack.c.l.b16 %v120
  %v125 = vunpack.c.h.b16 %v120
  %v126 = vunpack.c.l.b16 %v121
  %v127 = vunpack.c.h.b16 %v121
  %v128 = vpack.c.b16 %v124, %v124
  %v129 = vpack.c.b16 %v125, %v125
  %v130 = vpack.c.b16 %v126, %v126
  %v131 = vpack.c.b16 %v127, %v127
  %136 = vst [vmem:[%s3] sm:$0xf] %v128
  %137 = vst [vmem:[%s3 + $0x4] sm:$0xf] %v129
  %138 = vst [vmem:[%s3 + $0x8] sm:$0xf] %v130
  %139 = vst [vmem:[%s3 + $0xc] sm:$0xf] %v131
  // Predicated region
  $region14: #{sconv2d_forward.7} parent=0 // pred_check
    _
  $region15: #{sconv2d_forward.7} parent=0 // pred_check_branch
    %141 = sbr.rel (0) target = $region17
  $region16: #{sconv2d_forward.7} parent=0 // pred_region
    _
  $region17: #{sconv2d_forward.7} parent=0 // pred_fallthru
    _
  // Predicated region
  $region18: #{sconv2d_forward.7} parent=0 // pred_check
    _
  $region19: #{sconv2d_forward.7} parent=0 // pred_check_branch
    %143 = sbr.rel (0) target = $region21
  $region20: #{sconv2d_forward.7} parent=0 // pred_region
    _
  $region21: #{sconv2d_forward.7} parent=0 // pred_fallthru
    _

// kernel: sconv2d_forward.6
$region0: #{sconv2d_forward.6}
  #allocation0 [shape = 'u32[]', space=smem, size = 0x4, offset = 0x4, fixed_abs, tag = 'smem constant byte address 0x4 - core index']
  #allocation1 [shape = 'u32[144,128]{1,0:T(1,128)}', space=vmem, size = 0x12000, scoped, tag = 'internal scratch']
  %s0 = inlined_call_operand.vmem [shape: bf16[128,36], index: 0, kind: input, shape index: {}]
  %s1 = inlined_call_operand.vmem [shape: bf16[36,128], index: 1, kind: input, shape index: {}]
  %s2 = inlined_call_operand.vmem [shape: f32[1,128], index: 2, kind: input, shape index: {}]
  %s3 = inlined_call_operand.vmem [shape: bf16[128,128], index: 3, kind: output, shape index: {}]
  %s4 = sld [smem:[#allocation0]]
  $region22: #{sconv2d_forward.6} parent=0
    _
  %s6 = ssub.s32 1, %s4
  %s7 = scalar_select 0, %s6, %s4
  // Predicated region
  $region2: #{sconv2d_forward.6} parent=0 // pred_check
    _
  $region3: #{sconv2d_forward.6} parent=0 // pred_check_branch
    %9 = sbr.rel (0) target = $region5
  $region4: #{sconv2d_forward.6} parent=0 // pred_region
    _
  $region5: #{sconv2d_forward.6} parent=0 // pred_fallthru
    _
  // Predicated region
  $region6: #{sconv2d_forward.6} parent=0 // pred_check
    _
  $region7: #{sconv2d_forward.6} parent=0 // pred_check_branch
    %11 = sbr.rel (0) target = $region9
  $region8: #{sconv2d_forward.6} parent=0 // pred_region
    _
  $region9: #{sconv2d_forward.6} parent=0 // pred_fallthru
    _
  // Predicated region
  $region10: #{sconv2d_forward.6} parent=0 // pred_check
    _
  $region11: #{sconv2d_forward.6} parent=0 // pred_check_branch
    %13 = sbr.rel (0) target = $region13
  $region12: #{sconv2d_forward.6} parent=0 // pred_region
    _
  $region13: #{sconv2d_forward.6} parent=0 // pred_fallthru
    _
  %v15 = vld [vmem:[%s0] sm:$0xf]
  %v16 = vld [vmem:[%s0 + $0x4] sm:$0xf]
  %v17 = vld [vmem:[%s0 + $0x8] sm:$0xf]
  %v18 = vld [vmem:[%s0 + $0xc] sm:$0xf]
  %v19 = vld [vmem:[%s0 + $0x10] sm:$0xf]
  %v20 = vld [vmem:[%s0 + $0x14] sm:$0xf]
  %v21 = vld [vmem:[%s0 + $0x18] sm:$0xf]
  %v22 = vld [vmem:[%s0 + $0x1c] sm:$0xf]
  %v23 = vld [vmem:[%s0 + $0x20] sm:$0xf]
  %v24 = vld [vmem:[%s0 + $0x24] sm:$0xf]
  %v25 = vld [vmem:[%s0 + $0x28] sm:$0xf]
  %v26 = vld [vmem:[%s0 + $0x2c] sm:$0xf]
  %v27 = vld [vmem:[%s0 + $0x30] sm:$0xf]
  %v28 = vld [vmem:[%s0 + $0x34] sm:$0xf]
  %v29 = vld [vmem:[%s0 + $0x38] sm:$0xf]
  %v30 = vld [vmem:[%s0 + $0x3c] sm:$0xf]
  %v31 = vld [vmem:[%s1] sm:$0xf]
  %v32 = vld [vmem:[%s1 + $0x4] sm:$0xf]
  %v33 = vld [vmem:[%s1 + $0x8] sm:$0xf]
  %v34 = vld [vmem:[%s1 + $0xc] sm:$0xf]
  %v35 = vld [vmem:[%s1 + $0x10] sm:$0x3]
  %v36 = vld [vmem:[%s2] sm:$0x1]
  %v38 = vlaneseq
  %v39 = vshrl.u32 %v38, 7
  %v40 = vsub.s32 0, %v39
  %v41 = vrot.slane %v36, %v40
  %v59 = vunpack.c.l.b16 %v15
  %v60 = vunpack.c.l.b16 %v16
  %v61 = vunpack.c.l.b16 %v17
  %v62 = vunpack.c.l.b16 %v18
  %v63 = vunpack.c.l.b16 %v19
  %v64 = vunpack.c.l.b16 %v20
  %v65 = vunpack.c.l.b16 %v21
  %v66 = vunpack.c.l.b16 %v22
  %v67 = vunpack.c.l.b16 %v23
  %v68 = vunpack.c.l.b16 %v24
  %v69 = vunpack.c.l.b16 %v25
  %v70 = vunpack.c.l.b16 %v26
  %v71 = vunpack.c.l.b16 %v27
  %v72 = vunpack.c.l.b16 %v28
  %v73 = vunpack.c.l.b16 %v29
  %v74 = vunpack.c.l.b16 %v30
  %v75 = vpack.c.b16 %v60, %v59
  %v76 = vpack.c.b16 %v62, %v61
  %v77 = vpack.c.b16 %v64, %v63
  %v78 = vpack.c.b16 %v66, %v65
  %v79 = vpack.c.b16 %v68, %v67
  %v80 = vpack.c.b16 %v70, %v69
  %v81 = vpack.c.b16 %v72, %v71
  %v82 = vpack.c.b16 %v74, %v73
  %v88 = vunpack.c.l.b16 %v31
  %v89 = vunpack.c.l.b16 %v32
  %v90 = vunpack.c.l.b16 %v33
  %v91 = vunpack.c.l.b16 %v34
  %v92 = vunpack.c.l.b16 %v35
  %v93 = vpack.c.b16 %v89, %v88
  %v94 = vpack.c.b16 %v91, %v90
  %v95 = vpack.c.b16 %v92, %v92
  %vm98 = vcmask 293888
  %v100 = vsel %vm98, %v75, 0
  %v103 = vsel %vm98, %v76, 0
  %v106 = vsel %vm98, %v77, 0
  %v109 = vsel %vm98, %v78, 0
  %v112 = vsel %vm98, %v79, 0
  %v115 = vsel %vm98, %v80, 0
  %v118 = vsel %vm98, %v81, 0
  %v121 = vsel %vm98, %v82, 0
  %vm123 = vcmask 1041408
  %v125 = vsel %vm123, %v95, 0
  %127 = vmatprep.subr.bf16.mxu0 0
  %128 = vmatpush1.bf16.msra.mxu0 %v93
  %129 = vmatprep.subr.bf16.mxu0 0
  %130 = vmatpush1.bf16.msra.mxu0 %v94
  %131 = vmatprep.subr.bf16.mxu0 0
  %132 = vmatpush1.bf16.msra.mxu0 %v125
  %133 = vmatprep.subr.bf16.mxu0 0
  %134 = vmatpush1.bf16.msra.mxu0 0
  %135 = vmatprep.subr.bf16.mxu0 0
  %136 = vmatpush1.bf16.msra.mxu0 0
  %137 = vmatprep.subr.bf16.mxu0 0
  %138 = vmatpush1.bf16.msra.mxu0 0
  %139 = vmatprep.subr.bf16.mxu0 0
  %140 = vmatpush1.bf16.msra.mxu0 0
  %141 = vmatprep.subr.bf16.mxu0 0
  %142 = vmatpush1.bf16.msra.mxu0 0
  %143 = vmatprep.subr.bf16.mxu0 0
  %144 = vmatpush1.bf16.msra.mxu0 0
  %145 = vmatprep.subr.bf16.mxu0 0
  %146 = vmatpush1.bf16.msra.mxu0 0
  %147 = vmatprep.subr.bf16.mxu0 0
  %148 = vmatpush1.bf16.msra.mxu0 0
  %149 = vmatprep.subr.bf16.mxu0 0
  %150 = vmatpush1.bf16.msra.mxu0 0
  %151 = vmatprep.subr.bf16.mxu0 0
  %152 = vmatpush1.bf16.msra.mxu0 0
  %153 = vmatprep.subr.bf16.mxu0 0
  %154 = vmatpush1.bf16.msra.mxu0 0
  %155 = vmatprep.subr.bf16.mxu0 0
  %156 = vmatpush1.bf16.msra.mxu0 0
  %157 = vmatprep.subr.bf16.mxu0 0
  %158 = vmatpush1.bf16.msra.mxu0 0
  %159 = vmatprep.mubr.bf16.mxu0 0
  %160 = vmatmul.mubr.bf16.gmra.mrb[0].mxu0 %v100
  %v161 = vpop.f32.mrb[0].mxu0
  %v162 = vadd.f32 %v41, %v161
  %v163 = vpop.f32.mrb[0].mxu0
  %v164 = vpop.f32.mrb[0].mxu0
  %v165 = vadd.f32 %v41, %v164
  %v166 = vpop.f32.mrb[0].mxu0
  %167 = vmatprep.mubr.bf16.mxu0 0
  %168 = vmatmul.mubr.bf16.gmra.mrb[0].mxu0 %v103
  %v169 = vpop.f32.mrb[0].mxu0
  %v170 = vadd.f32 %v41, %v169
  %v171 = vpop.f32.mrb[0].mxu0
  %v172 = vpop.f32.mrb[0].mxu0
  %v173 = vadd.f32 %v41, %v172
  %v174 = vpop.f32.mrb[0].mxu0
  %175 = vmatprep.mubr.bf16.mxu0 0
  %176 = vmatmul.mubr.bf16.gmra.mrb[0].mxu0 %v106
  %v177 = vpop.f32.mrb[0].mxu0
  %v178 = vadd.f32 %v41, %v177
  %v179 = vpop.f32.mrb[0].mxu0
  %v180 = vpop.f32.mrb[0].mxu0
  %v181 = vadd.f32 %v41, %v180
  %v182 = vpop.f32.mrb[0].mxu0
  %183 = vmatprep.mubr.bf16.mxu0 0
  %184 = vmatmul.mubr.bf16.gmra.mrb[0].mxu0 %v109
  %v185 = vpop.f32.mrb[0].mxu0
  %v186 = vadd.f32 %v41, %v185
  %v187 = vpop.f32.mrb[0].mxu0
  %v188 = vpop.f32.mrb[0].mxu0
  %v189 = vadd.f32 %v41, %v188
  %v190 = vpop.f32.mrb[0].mxu0
  %191 = vmatprep.mubr.bf16.mxu0 0
  %192 = vmatmul.mubr.bf16.gmra.mrb[0].mxu0 %v112
  %v193 = vpop.f32.mrb[0].mxu0
  %v194 = vadd.f32 %v41, %v193
  %v195 = vpop.f32.mrb[0].mxu0
  %v196 = vpop.f32.mrb[0].mxu0
  %v197 = vadd.f32 %v41, %v196
  %v198 = vpop.f32.mrb[0].mxu0
  %199 = vmatprep.mubr.bf16.mxu0 0
  %200 = vmatmul.mubr.bf16.gmra.mrb[0].mxu0 %v115
  %v201 = vpop.f32.mrb[0].mxu0
  %v202 = vadd.f32 %v41, %v201
  %v203 = vpop.f32.mrb[0].mxu0
  %v204 = vpop.f32.mrb[0].mxu0
  %v205 = vadd.f32 %v41, %v204
  %v206 = vpop.f32.mrb[0].mxu0
  %207 = vmatprep.mubr.bf16.mxu0 0
  %208 = vmatmul.mubr.bf16.gmra.mrb[0].mxu0 %v118
  %v209 = vpop.f32.mrb[0].mxu0
  %v210 = vadd.f32 %v41, %v209
  %v211 = vpop.f32.mrb[0].mxu0
  %v212 = vpop.f32.mrb[0].mxu0
  %v213 = vadd.f32 %v41, %v212
  %v214 = vpop.f32.mrb[0].mxu0
  %215 = vmatprep.mubr.bf16.mxu0 0
  %216 = vmatmul.mubr.bf16.gmra.mrb[0].mxu0 %v121
  %v217 = vpop.f32.mrb[0].mxu0
  %v218 = vadd.f32 %v41, %v217
  %v219 = vpop.f32.mrb[0].mxu0
  %v220 = vpop.f32.mrb[0].mxu0
  %v221 = vadd.f32 %v41, %v220
  %v222 = vpop.f32.mrb[0].mxu0
  %223 = vdwg.mxu0
  %v224 = vmax.f32 %v162, 0.0
  %v225 = vmax.f32 %v165, 0.0
  %v226 = vmax.f32 %v170, 0.0
  %v227 = vmax.f32 %v173, 0.0
  %v228 = vmax.f32 %v178, 0.0
  %v229 = vmax.f32 %v181, 0.0
  %v230 = vmax.f32 %v186, 0.0
  %v231 = vmax.f32 %v189, 0.0
  %v232 = vmax.f32 %v194, 0.0
  %v233 = vmax.f32 %v197, 0.0
  %v234 = vmax.f32 %v202, 0.0
  %v235 = vmax.f32 %v205, 0.0
  %v236 = vmax.f32 %v210, 0.0
  %v237 = vmax.f32 %v213, 0.0
  %v238 = vmax.f32 %v218, 0.0
  %v239 = vmax.f32 %v221, 0.0
  %v240 = vpack.c.bf16 %v225, %v224
  %v241 = vpack.c.bf16 %v227, %v226
  %v242 = vpack.c.bf16 %v229, %v228
  %v243 = vpack.c.bf16 %v231, %v230
  %v244 = vpack.c.bf16 %v233, %v232
  %v245 = vpack.c.bf16 %v235, %v234
  %v246 = vpack.c.bf16 %v237, %v236
  %v247 = vpack.c.bf16 %v239, %v238
  %v256 = vunpack.c.l.b16 %v240
  %v257 = vunpack.c.h.b16 %v240
  %v258 = vunpack.c.l.b16 %v241
  %v259 = vunpack.c.h.b16 %v241
  %v260 = vunpack.c.l.b16 %v242
  %v261 = vunpack.c.h.b16 %v242
  %v262 = vunpack.c.l.b16 %v243
  %v263 = vunpack.c.h.b16 %v243
  %v264 = vunpack.c.l.b16 %v244
  %v265 = vunpack.c.h.b16 %v244
  %v266 = vunpack.c.l.b16 %v245
  %v267 = vunpack.c.h.b16 %v245
  %v268 = vunpack.c.l.b16 %v246
  %v269 = vunpack.c.h.b16 %v246
  %v270 = vunpack.c.l.b16 %v247
  %v271 = vunpack.c.h.b16 %v247
  %v272 = vpack.c.b16 %v256, %v256
  %v273 = vpack.c.b16 %v257, %v257
  %v274 = vpack.c.b16 %v258, %v258
  %v275 = vpack.c.b16 %v259, %v259
  %v276 = vpack.c.b16 %v260, %v260
  %v277 = vpack.c.b16 %v261, %v261
  %v278 = vpack.c.b16 %v262, %v262
  %v279 = vpack.c.b16 %v263, %v263
  %v280 = vpack.c.b16 %v264, %v264
  %v281 = vpack.c.b16 %v265, %v265
  %v282 = vpack.c.b16 %v266, %v266
  %v283 = vpack.c.b16 %v267, %v267
  %v284 = vpack.c.b16 %v268, %v268
  %v285 = vpack.c.b16 %v269, %v269
  %v286 = vpack.c.b16 %v270, %v270
  %v287 = vpack.c.b16 %v271, %v271
  %304 = vst [vmem:[%s3] sm:$0xf] %v272
  %305 = vst [vmem:[%s3 + $0x4] sm:$0xf] %v273
  %306 = vst [vmem:[%s3 + $0x8] sm:$0xf] %v274
  %307 = vst [vmem:[%s3 + $0xc] sm:$0xf] %v275
  %308 = vst [vmem:[%s3 + $0x10] sm:$0xf] %v276
  %309 = vst [vmem:[%s3 + $0x14] sm:$0xf] %v277
  %310 = vst [vmem:[%s3 + $0x18] sm:$0xf] %v278
  %311 = vst [vmem:[%s3 + $0x1c] sm:$0xf] %v279
  %312 = vst [vmem:[%s3 + $0x20] sm:$0xf] %v280
  %313 = vst [vmem:[%s3 + $0x24] sm:$0xf] %v281
  %314 = vst [vmem:[%s3 + $0x28] sm:$0xf] %v282
  %315 = vst [vmem:[%s3 + $0x2c] sm:$0xf] %v283
  %316 = vst [vmem:[%s3 + $0x30] sm:$0xf] %v284
  %317 = vst [vmem:[%s3 + $0x34] sm:$0xf] %v285
  %318 = vst [vmem:[%s3 + $0x38] sm:$0xf] %v286
  %319 = vst [vmem:[%s3 + $0x3c] sm:$0xf] %v287
  // Predicated region
  $region14: #{sconv2d_forward.6} parent=0 // pred_check
    _
  $region15: #{sconv2d_forward.6} parent=0 // pred_check_branch
    %321 = sbr.rel (0) target = $region17
  $region16: #{sconv2d_forward.6} parent=0 // pred_region
    _
  $region17: #{sconv2d_forward.6} parent=0 // pred_fallthru
    _
  // Predicated region
  $region18: #{sconv2d_forward.6} parent=0 // pred_check
    _
  $region19: #{sconv2d_forward.6} parent=0 // pred_check_branch
    %323 = sbr.rel (0) target = $region21
  $region20: #{sconv2d_forward.6} parent=0 // pred_region
    _
  $region21: #{sconv2d_forward.6} parent=0 // pred_fallthru
    _

// kernel: sconv2d_forward.5
$region0: #{sconv2d_forward.5}
  #allocation0 [shape = 'u32[]', space=smem, size = 0x4, offset = 0x4, fixed_abs, tag = 'smem constant byte address 0x4 - core index']
  #allocation1 [shape = 'u32[144,128]{1,0:T(1,128)}', space=vmem, size = 0x12000, scoped, tag = 'internal scratch']
  %s0 = inlined_call_operand.vmem [shape: bf16[512,36], index: 0, kind: input, shape index: {}]
  %s1 = inlined_call_operand.vmem [shape: bf16[36,128], index: 1, kind: input, shape index: {}]
  %s2 = inlined_call_operand.vmem [shape: f32[1,128], index: 2, kind: input, shape index: {}]
  %s3 = inlined_call_operand.vmem [shape: bf16[512,128], index: 3, kind: output, shape index: {}]
  %s4 = sld [smem:[#allocation0]]
  $region22: #{sconv2d_forward.5} parent=0
    _
  %s6 = ssub.s32 1, %s4
  %s7 = scalar_select 0, %s6, %s4
  // Predicated region
  $region2: #{sconv2d_forward.5} parent=0 // pred_check
    _
  $region3: #{sconv2d_forward.5} parent=0 // pred_check_branch
    %9 = sbr.rel (0) target = $region5
  $region4: #{sconv2d_forward.5} parent=0 // pred_region
    _
  $region5: #{sconv2d_forward.5} parent=0 // pred_fallthru
    _
  // Predicated region
  $region6: #{sconv2d_forward.5} parent=0 // pred_check
    _
  $region7: #{sconv2d_forward.5} parent=0 // pred_check_branch
    %11 = sbr.rel (0) target = $region9
  $region8: #{sconv2d_forward.5} parent=0 // pred_region
    _
  $region9: #{sconv2d_forward.5} parent=0 // pred_fallthru
    _
  // Predicated region
  $region10: #{sconv2d_forward.5} parent=0 // pred_check
    _
  $region11: #{sconv2d_forward.5} parent=0 // pred_check_branch
    %13 = sbr.rel (0) target = $region13
  $region12: #{sconv2d_forward.5} parent=0 // pred_region
    _
  $region13: #{sconv2d_forward.5} parent=0 // pred_fallthru
    _
  %v15 = vld [vmem:[%s0] sm:$0xf]
  %v16 = vld [vmem:[%s0 + $0x4] sm:$0xf]
  %v17 = vld [vmem:[%s0 + $0x8] sm:$0xf]
  %v18 = vld [vmem:[%s0 + $0xc] sm:$0xf]
  %v19 = vld [vmem:[%s0 + $0x10] sm:$0xf]
  %v20 = vld [vmem:[%s0 + $0x14] sm:$0xf]
  %v21 = vld [vmem:[%s0 + $0x18] sm:$0xf]
  %v22 = vld [vmem:[%s0 + $0x1c] sm:$0xf]
  %v23 = vld [vmem:[%s0 + $0x20] sm:$0xf]
  %v24 = vld [vmem:[%s0 + $0x24] sm:$0xf]
  %v25 = vld [vmem:[%s0 + $0x28] sm:$0xf]
  %v26 = vld [vmem:[%s0 + $0x2c] sm:$0xf]
  %v27 = vld [vmem:[%s0 + $0x30] sm:$0xf]
  %v28 = vld [vmem:[%s0 + $0x34] sm:$0xf]
  %v29 = vld [vmem:[%s0 + $0x38] sm:$0xf]
  %v30 = vld [vmem:[%s0 + $0x3c] sm:$0xf]
  %v31 = vld [vmem:[%s0 + $0x40] sm:$0xf]
  %v32 = vld [vmem:[%s0 + $0x44] sm:$0xf]
  %v33 = vld [vmem:[%s0 + $0x48] sm:$0xf]
  %v34 = vld [vmem:[%s0 + $0x4c] sm:$0xf]
  %v35 = vld [vmem:[%s0 + $0x50] sm:$0xf]
  %v36 = vld [vmem:[%s0 + $0x54] sm:$0xf]
  %v37 = vld [vmem:[%s0 + $0x58] sm:$0xf]
  %v38 = vld [vmem:[%s0 + $0x5c] sm:$0xf]
  %v39 = vld [vmem:[%s0 + $0x60] sm:$0xf]
  %v40 = vld [vmem:[%s0 + $0x64] sm:$0xf]
  %v41 = vld [vmem:[%s0 + $0x68] sm:$0xf]
  %v42 = vld [vmem:[%s0 + $0x6c] sm:$0xf]
  %v43 = vld [vmem:[%s0 + $0x70] sm:$0xf]
  %v44 = vld [vmem:[%s0 + $0x74] sm:$0xf]
  %v45 = vld [vmem:[%s0 + $0x78] sm:$0xf]
  %v46 = vld [vmem:[%s0 + $0x7c] sm:$0xf]
  %v47 = vld [vmem:[%s0 + $0x80] sm:$0xf]
  %v48 = vld [vmem:[%s0 + $0x84] sm:$0xf]
  %v49 = vld [vmem:[%s0 + $0x88] sm:$0xf]
  %v50 = vld [vmem:[%s0 + $0x8c] sm:$0xf]
  %v51 = vld [vmem:[%s0 + $0x90] sm:$0xf]
  %v52 = vld [vmem:[%s0 + $0x94] sm:$0xf]
  %v53 = vld [vmem:[%s0 + $0x98] sm:$0xf]
  %v54 = vld [vmem:[%s0 + $0x9c] sm:$0xf]
  %v55 = vld [vmem:[%s0 + $0xa0] sm:$0xf]
  %v56 = vld [vmem:[%s0 + $0xa4] sm:$0xf]
  %v57 = vld [vmem:[%s0 + $0xa8] sm:$0xf]
  %v58 = vld [vmem:[%s0 + $0xac] sm:$0xf]
  %v59 = vld [vmem:[%s0 + $0xb0] sm:$0xf]
  %v60 = vld [vmem:[%s0 + $0xb4] sm:$0xf]
  %v61 = vld [vmem:[%s0 + $0xb8] sm:$0xf]
  %v62 = vld [vmem:[%s0 + $0xbc] sm:$0xf]
  %v63 = vld [vmem:[%s0 + $0xc0] sm:$0xf]
  %v64 = vld [vmem:[%s0 + $0xc4] sm:$0xf]
  %v65 = vld [vmem:[%s0 + $0xc8] sm:$0xf]
  %v66 = vld [vmem:[%s0 + $0xcc] sm:$0xf]
  %v67 = vld [vmem:[%s0 + $0xd0] sm:$0xf]
  %v68 = vld [vmem:[%s0 + $0xd4] sm:$0xf]
  %v69 = vld [vmem:[%s0 + $0xd8] sm:$0xf]
  %v70 = vld [vmem:[%s0 + $0xdc] sm:$0xf]
  %v71 = vld [vmem:[%s0 + $0xe0] sm:$0xf]
  %v72 = vld [vmem:[%s0 + $0xe4] sm:$0xf]
  %v73 = vld [vmem:[%s0 + $0xe8] sm:$0xf]
  %v74 = vld [vmem:[%s0 + $0xec] sm:$0xf]
  %v75 = vld [vmem:[%s0 + $0xf0] sm:$0xf]
  %v76 = vld [vmem:[%s0 + $0xf4] sm:$0xf]
  %v77 = vld [vmem:[%s0 + $0xf8] sm:$0xf]
  %v78 = vld [vmem:[%s0 + $0xfc] sm:$0xf]
  %v79 = vld [vmem:[%s1] sm:$0xf]
  %v80 = vld [vmem:[%s1 + $0x4] sm:$0xf]
  %v81 = vld [vmem:[%s1 + $0x8] sm:$0xf]
  %v82 = vld [vmem:[%s1 + $0xc] sm:$0xf]
  %v83 = vld [vmem:[%s1 + $0x10] sm:$0x3]
  %v84 = vld [vmem:[%s2] sm:$0x1]
  %v86 = vlaneseq
  %v87 = vshrl.u32 %v86, 7
  %v88 = vsub.s32 0, %v87
  %v89 = vrot.slane %v84, %v88
  %v155 = vunpack.c.l.b16 %v15
  %v156 = vunpack.c.l.b16 %v16
  %v157 = vunpack.c.l.b16 %v17
  %v158 = vunpack.c.l.b16 %v18
  %v159 = vunpack.c.l.b16 %v19
  %v160 = vunpack.c.l.b16 %v20
  %v161 = vunpack.c.l.b16 %v21
  %v162 = vunpack.c.l.b16 %v22
  %v163 = vunpack.c.l.b16 %v23
  %v164 = vunpack.c.l.b16 %v24
  %v165 = vunpack.c.l.b16 %v25
  %v166 = vunpack.c.l.b16 %v26
  %v167 = vunpack.c.l.b16 %v27
  %v168 = vunpack.c.l.b16 %v28
  %v169 = vunpack.c.l.b16 %v29
  %v170 = vunpack.c.l.b16 %v30
  %v171 = vunpack.c.l.b16 %v31
  %v172 = vunpack.c.l.b16 %v32
  %v173 = vunpack.c.l.b16 %v33
  %v174 = vunpack.c.l.b16 %v34
  %v175 = vunpack.c.l.b16 %v35
  %v176 = vunpack.c.l.b16 %v36
  %v177 = vunpack.c.l.b16 %v37
  %v178 = vunpack.c.l.b16 %v38
  %v179 = vunpack.c.l.b16 %v39
  %v180 = vunpack.c.l.b16 %v40
  %v181 = vunpack.c.l.b16 %v41
  %v182 = vunpack.c.l.b16 %v42
  %v183 = vunpack.c.l.b16 %v43
  %v184 = vunpack.c.l.b16 %v44
  %v185 = vunpack.c.l.b16 %v45
  %v186 = vunpack.c.l.b16 %v46
  %v187 = vunpack.c.l.b16 %v47
  %v188 = vunpack.c.l.b16 %v48
  %v189 = vunpack.c.l.b16 %v49
  %v190 = vunpack.c.l.b16 %v50
  %v191 = vunpack.c.l.b16 %v51
  %v192 = vunpack.c.l.b16 %v52
  %v193 = vunpack.c.l.b16 %v53
  %v194 = vunpack.c.l.b16 %v54
  %v195 = vunpack.c.l.b16 %v55
  %v196 = vunpack.c.l.b16 %v56
  %v197 = vunpack.c.l.b16 %v57
  %v198 = vunpack.c.l.b16 %v58
  %v199 = vunpack.c.l.b16 %v59
  %v200 = vunpack.c.l.b16 %v60
  %v201 = vunpack.c.l.b16 %v61
  %v202 = vunpack.c.l.b16 %v62
  %v203 = vunpack.c.l.b16 %v63
  %v204 = vunpack.c.l.b16 %v64
  %v205 = vunpack.c.l.b16 %v65
  %v206 = vunpack.c.l.b16 %v66
  %v207 = vunpack.c.l.b16 %v67
  %v208 = vunpack.c.l.b16 %v68
  %v209 = vunpack.c.l.b16 %v69
  %v210 = vunpack.c.l.b16 %v70
  %v211 = vunpack.c.l.b16 %v71
  %v212 = vunpack.c.l.b16 %v72
  %v213 = vunpack.c.l.b16 %v73
  %v214 = vunpack.c.l.b16 %v74
  %v215 = vunpack.c.l.b16 %v75
  %v216 = vunpack.c.l.b16 %v76
  %v217 = vunpack.c.l.b16 %v77
  %v218 = vunpack.c.l.b16 %v78
  %v219 = vpack.c.b16 %v156, %v155
  %v220 = vpack.c.b16 %v158, %v157
  %v221 = vpack.c.b16 %v160, %v159
  %v222 = vpack.c.b16 %v162, %v161
  %v223 = vpack.c.b16 %v164, %v163
  %v224 = vpack.c.b16 %v166, %v165
  %v225 = vpack.c.b16 %v168, %v167
  %v226 = vpack.c.b16 %v170, %v169
  %v227 = vpack.c.b16 %v172, %v171
  %v228 = vpack.c.b16 %v174, %v173
  %v229 = vpack.c.b16 %v176, %v175
  %v230 = vpack.c.b16 %v178, %v177
  %v231 = vpack.c.b16 %v180, %v179
  %v232 = vpack.c.b16 %v182, %v181
  %v233 = vpack.c.b16 %v184, %v183
  %v234 = vpack.c.b16 %v186, %v185
  %v235 = vpack.c.b16 %v188, %v187
  %v236 = vpack.c.b16 %v190, %v189
  %v237 = vpack.c.b16 %v192, %v191
  %v238 = vpack.c.b16 %v194, %v193
  %v239 = vpack.c.b16 %v196, %v195
  %v240 = vpack.c.b16 %v198, %v197
  %v241 = vpack.c.b16 %v200, %v199
  %v242 = vpack.c.b16 %v202, %v201
  %v243 = vpack.c.b16 %v204, %v203
  %v244 = vpack.c.b16 %v206, %v205
  %v245 = vpack.c.b16 %v208, %v207
  %v246 = vpack.c.b16 %v210, %v209
  %v247 = vpack.c.b16 %v212, %v211
  %v248 = vpack.c.b16 %v214, %v213
  %v249 = vpack.c.b16 %v216, %v215
  %v250 = vpack.c.b16 %v218, %v217
  %v256 = vunpack.c.l.b16 %v79
  %v257 = vunpack.c.l.b16 %v80
  %v258 = vunpack.c.l.b16 %v81
  %v259 = vunpack.c.l.b16 %v82
  %v260 = vunpack.c.l.b16 %v83
  %v261 = vpack.c.b16 %v257, %v256
  %v262 = vpack.c.b16 %v259, %v258
  %v263 = vpack.c.b16 %v260, %v260
  %vm266 = vcmask 293888
  %v268 = vsel %vm266, %v219, 0
  %v271 = vsel %vm266, %v220, 0
  %v274 = vsel %vm266, %v221, 0
  %v277 = vsel %vm266, %v222, 0
  %v280 = vsel %vm266, %v223, 0
  %v283 = vsel %vm266, %v224, 0
  %v286 = vsel %vm266, %v225, 0
  %v289 = vsel %vm266, %v226, 0
  %v292 = vsel %vm266, %v227, 0
  %v295 = vsel %vm266, %v228, 0
  %v298 = vsel %vm266, %v229, 0
  %v301 = vsel %vm266, %v230, 0
  %v304 = vsel %vm266, %v231, 0
  %v307 = vsel %vm266, %v232, 0
  %v310 = vsel %vm266, %v233, 0
  %v313 = vsel %vm266, %v234, 0
  %v316 = vsel %vm266, %v235, 0
  %v319 = vsel %vm266, %v236, 0
  %v322 = vsel %vm266, %v237, 0
  %v325 = vsel %vm266, %v238, 0
  %v328 = vsel %vm266, %v239, 0
  %v331 = vsel %vm266, %v240, 0
  %v334 = vsel %vm266, %v241, 0
  %v337 = vsel %vm266, %v242, 0
  %v340 = vsel %vm266, %v243, 0
  %v343 = vsel %vm266, %v244, 0
  %v346 = vsel %vm266, %v245, 0
  %v349 = vsel %vm266, %v246, 0
  %v352 = vsel %vm266, %v247, 0
  %v355 = vsel %vm266, %v248, 0
  %v358 = vsel %vm266, %v249, 0
  %v361 = vsel %vm266, %v250, 0
  %vm363 = vcmask 1041408
  %v365 = vsel %vm363, %v263, 0
  %367 = vmatprep.subr.bf16.mxu0 0
  %368 = vmatpush1.bf16.msra.mxu0 %v261
  %369 = vmatprep.subr.bf16.mxu0 0
  %370 = vmatpush1.bf16.msra.mxu0 %v262
  %371 = vmatprep.subr.bf16.mxu0 0
  %372 = vmatpush1.bf16.msra.mxu0 %v365
  %373 = vmatprep.subr.bf16.mxu0 0
  %374 = vmatpush1.bf16.msra.mxu0 0
  %375 = vmatprep.subr.bf16.mxu0 0
  %376 = vmatpush1.bf16.msra.mxu0 0
  %377 = vmatprep.subr.bf16.mxu0 0
  %378 = vmatpush1.bf16.msra.mxu0 0
  %379 = vmatprep.subr.bf16.mxu0 0
  %380 = vmatpush1.bf16.msra.mxu0 0
  %381 = vmatprep.subr.bf16.mxu0 0
  %382 = vmatpush1.bf16.msra.mxu0 0
  %383 = vmatprep.subr.bf16.mxu0 0
  %384 = vmatpush1.bf16.msra.mxu0 0
  %385 = vmatprep.subr.bf16.mxu0 0
  %386 = vmatpush1.bf16.msra.mxu0 0
  %387 = vmatprep.subr.bf16.mxu0 0
  %388 = vmatpush1.bf16.msra.mxu0 0
  %389 = vmatprep.subr.bf16.mxu0 0
  %390 = vmatpush1.bf16.msra.mxu0 0
  %391 = vmatprep.subr.bf16.mxu0 0
  %392 = vmatpush1.bf16.msra.mxu0 0
  %393 = vmatprep.subr.bf16.mxu0 0
  %394 = vmatpush1.bf16.msra.mxu0 0
  %395 = vmatprep.subr.bf16.mxu0 0
  %396 = vmatpush1.bf16.msra.mxu0 0
  %397 = vmatprep.subr.bf16.mxu0 0
  %398 = vmatpush1.bf16.msra.mxu0 0
  %399 = vmatprep.mubr.bf16.mxu0 0
  %400 = vmatmul.mubr.bf16.gmra.mrb[0].mxu0 %v268
  %v401 = vpop.f32.mrb[0].mxu0
  %v402 = vadd.f32 %v89, %v401
  %v403 = vpop.f32.mrb[0].mxu0
  %v404 = vpop.f32.mrb[0].mxu0
  %v405 = vadd.f32 %v89, %v404
  %v406 = vpop.f32.mrb[0].mxu0
  %407 = vmatprep.mubr.bf16.mxu0 0
  %408 = vmatmul.mubr.bf16.gmra.mrb[0].mxu0 %v271
  %v409 = vpop.f32.mrb[0].mxu0
  %v410 = vadd.f32 %v89, %v409
  %v411 = vpop.f32.mrb[0].mxu0
  %v412 = vpop.f32.mrb[0].mxu0
  %v413 = vadd.f32 %v89, %v412
  %v414 = vpop.f32.mrb[0].mxu0
  %415 = vmatprep.mubr.bf16.mxu0 0
  %416 = vmatmul.mubr.bf16.gmra.mrb[0].mxu0 %v274
  %v417 = vpop.f32.mrb[0].mxu0
  %v418 = vadd.f32 %v89, %v417
  %v419 = vpop.f32.mrb[0].mxu0
  %v420 = vpop.f32.mrb[0].mxu0
  %v421 = vadd.f32 %v89, %v420
  %v422 = vpop.f32.mrb[0].mxu0
  %423 = vmatprep.mubr.bf16.mxu0 0
  %424 = vmatmul.mubr.bf16.gmra.mrb[0].mxu0 %v277
  %v425 = vpop.f32.mrb[0].mxu0
  %v426 = vadd.f32 %v89, %v425
  %v427 = vpop.f32.mrb[0].mxu0
  %v428 = vpop.f32.mrb[0].mxu0
  %v429 = vadd.f32 %v89, %v428
  %v430 = vpop.f32.mrb[0].mxu0
  %431 = vmatprep.mubr.bf16.mxu0 0
  %432 = vmatmul.mubr.bf16.gmra.mrb[0].mxu0 %v280
  %v433 = vpop.f32.mrb[0].mxu0
  %v434 = vadd.f32 %v89, %v433
  %v435 = vpop.f32.mrb[0].mxu0
  %v436 = vpop.f32.mrb[0].mxu0
  %v437 = vadd.f32 %v89, %v436
  %v438 = vpop.f32.mrb[0].mxu0
  %439 = vmatprep.mubr.bf16.mxu0 0
  %440 = vmatmul.mubr.bf16.gmra.mrb[0].mxu0 %v283
  %v441 = vpop.f32.mrb[0].mxu0
  %v442 = vadd.f32 %v89, %v441
  %v443 = vpop.f32.mrb[0].mxu0
  %v444 = vpop.f32.mrb[0].mxu0
  %v445 = vadd.f32 %v89, %v444
  %v446 = vpop.f32.mrb[0].mxu0
  %447 = vmatprep.mubr.bf16.mxu0 0
  %448 = vmatmul.mubr.bf16.gmra.mrb[0].mxu0 %v286
  %v449 = vpop.f32.mrb[0].mxu0
  %v450 = vadd.f32 %v89, %v449
  %v451 = vpop.f32.mrb[0].mxu0
  %v452 = vpop.f32.mrb[0].mxu0
  %v453 = vadd.f32 %v89, %v452
  %v454 = vpop.f32.mrb[0].mxu0
  %455 = vmatprep.mubr.bf16.mxu0 0
  %456 = vmatmul.mubr.bf16.gmra.mrb[0].mxu0 %v289
  %v457 = vpop.f32.mrb[0].mxu0
  %v458 = vadd.f32 %v89, %v457
  %v459 = vpop.f32.mrb[0].mxu0
  %v460 = vpop.f32.mrb[0].mxu0
  %v461 = vadd.f32 %v89, %v460
  %v462 = vpop.f32.mrb[0].mxu0
  %463 = vmatprep.mubr.bf16.mxu0 0
  %464 = vmatmul.mubr.bf16.gmra.mrb[0].mxu0 %v292
  %v465 = vpop.f32.mrb[0].mxu0
  %v466 = vadd.f32 %v89, %v465
  %v467 = vpop.f32.mrb[0].mxu0
  %v468 = vpop.f32.mrb[0].mxu0
  %v469 = vadd.f32 %v89, %v468
  %v470 = vpop.f32.mrb[0].mxu0
  %471 = vmatprep.mubr.bf16.mxu0 0
  %472 = vmatmul.mubr.bf16.gmra.mrb[0].mxu0 %v295
  %v473 = vpop.f32.mrb[0].mxu0
  %v474 = vadd.f32 %v89, %v473
  %v475 = vpop.f32.mrb[0].mxu0
  %v476 = vpop.f32.mrb[0].mxu0
  %v477 = vadd.f32 %v89, %v476
  %v478 = vpop.f32.mrb[0].mxu0
  %479 = vmatprep.mubr.bf16.mxu0 0
  %480 = vmatmul.mubr.bf16.gmra.mrb[0].mxu0 %v298
  %v481 = vpop.f32.mrb[0].mxu0
  %v482 = vadd.f32 %v89, %v481
  %v483 = vpop.f32.mrb[0].mxu0
  %v484 = vpop.f32.mrb[0].mxu0
  %v485 = vadd.f32 %v89, %v484
  %v486 = vpop.f32.mrb[0].mxu0
  %487 = vmatprep.mubr.bf16.mxu0 0
  %488 = vmatmul.mubr.bf16.gmra.mrb[0].mxu0 %v301
  %v489 = vpop.f32.mrb[0].mxu0
  %v490 = vadd.f32 %v89, %v489
  %v491 = vpop.f32.mrb[0].mxu0
  %v492 = vpop.f32.mrb[0].mxu0
  %v493 = vadd.f32 %v89, %v492
  %v494 = vpop.f32.mrb[0].mxu0
  %495 = vmatprep.mubr.bf16.mxu0 0
  %496 = vmatmul.mubr.bf16.gmra.mrb[0].mxu0 %v304
  %v497 = vpop.f32.mrb[0].mxu0
  %v498 = vadd.f32 %v89, %v497
  %v499 = vpop.f32.mrb[0].mxu0
  %v500 = vpop.f32.mrb[0].mxu0
  %v501 = vadd.f32 %v89, %v500
  %v502 = vpop.f32.mrb[0].mxu0
  %503 = vmatprep.mubr.bf16.mxu0 0
  %504 = vmatmul.mubr.bf16.gmra.mrb[0].mxu0 %v307
  %v505 = vpop.f32.mrb[0].mxu0
  %v506 = vadd.f32 %v89, %v505
  %v507 = vpop.f32.mrb[0].mxu0
  %v508 = vpop.f32.mrb[0].mxu0
  %v509 = vadd.f32 %v89, %v508
  %v510 = vpop.f32.mrb[0].mxu0
  %511 = vmatprep.mubr.bf16.mxu0 0
  %512 = vmatmul.mubr.bf16.gmra.mrb[0].mxu0 %v310
  %v513 = vpop.f32.mrb[0].mxu0
  %v514 = vadd.f32 %v89, %v513
  %v515 = vpop.f32.mrb[0].mxu0
  %v516 = vpop.f32.mrb[0].mxu0
  %v517 = vadd.f32 %v89, %v516
  %v518 = vpop.f32.mrb[0].mxu0
  %519 = vmatprep.mubr.bf16.mxu0 0
  %520 = vmatmul.mubr.bf16.gmra.mrb[0].mxu0 %v313
  %v521 = vpop.f32.mrb[0].mxu0
  %v522 = vadd.f32 %v89, %v521
  %v523 = vpop.f32.mrb[0].mxu0
  %v524 = vpop.f32.mrb[0].mxu0
  %v525 = vadd.f32 %v89, %v524
  %v526 = vpop.f32.mrb[0].mxu0
  %527 = vmatprep.mubr.bf16.mxu0 0
  %528 = vmatmul.mubr.bf16.gmra.mrb[0].mxu0 %v316
  %v529 = vpop.f32.mrb[0].mxu0
  %v530 = vadd.f32 %v89, %v529
  %v531 = vpop.f32.mrb[0].mxu0
  %v532 = vpop.f32.mrb[0].mxu0
  %v533 = vadd.f32 %v89, %v532
  %v534 = vpop.f32.mrb[0].mxu0
  %535 = vmatprep.mubr.bf16.mxu0 0
  %536 = vmatmul.mubr.bf16.gmra.mrb[0].mxu0 %v319
  %v537 = vpop.f32.mrb[0].mxu0
  %v538 = vadd.f32 %v89, %v537
  %v539 = vpop.f32.mrb[0].mxu0
  %v540 = vpop.f32.mrb[0].mxu0
  %v541 = vadd.f32 %v89, %v540
  %v542 = vpop.f32.mrb[0].mxu0
  %543 = vmatprep.mubr.bf16.mxu0 0
  %544 = vmatmul.mubr.bf16.gmra.mrb[0].mxu0 %v322
  %v545 = vpop.f32.mrb[0].mxu0
  %v546 = vadd.f32 %v89, %v545
  %v547 = vpop.f32.mrb[0].mxu0
  %v548 = vpop.f32.mrb[0].mxu0
  %v549 = vadd.f32 %v89, %v548
  %v550 = vpop.f32.mrb[0].mxu0
  %551 = vmatprep.mubr.bf16.mxu0 0
  %552 = vmatmul.mubr.bf16.gmra.mrb[0].mxu0 %v325
  %v553 = vpop.f32.mrb[0].mxu0
  %v554 = vadd.f32 %v89, %v553
  %v555 = vpop.f32.mrb[0].mxu0
  %v556 = vpop.f32.mrb[0].mxu0
  %v557 = vadd.f32 %v89, %v556
  %v558 = vpop.f32.mrb[0].mxu0
  %559 = vmatprep.mubr.bf16.mxu0 0
  %560 = vmatmul.mubr.bf16.gmra.mrb[0].mxu0 %v328
  %v561 = vpop.f32.mrb[0].mxu0
  %v562 = vadd.f32 %v89, %v561
  %v563 = vpop.f32.mrb[0].mxu0
  %v564 = vpop.f32.mrb[0].mxu0
  %v565 = vadd.f32 %v89, %v564
  %v566 = vpop.f32.mrb[0].mxu0
  %567 = vmatprep.mubr.bf16.mxu0 0
  %568 = vmatmul.mubr.bf16.gmra.mrb[0].mxu0 %v331
  %v569 = vpop.f32.mrb[0].mxu0
  %v570 = vadd.f32 %v89, %v569
  %v571 = vpop.f32.mrb[0].mxu0
  %v572 = vpop.f32.mrb[0].mxu0
  %v573 = vadd.f32 %v89, %v572
  %v574 = vpop.f32.mrb[0].mxu0
  %575 = vmatprep.mubr.bf16.mxu0 0
  %576 = vmatmul.mubr.bf16.gmra.mrb[0].mxu0 %v334
  %v577 = vpop.f32.mrb[0].mxu0
  %v578 = vadd.f32 %v89, %v577
  %v579 = vpop.f32.mrb[0].mxu0
  %v580 = vpop.f32.mrb[0].mxu0
  %v581 = vadd.f32 %v89, %v580
  %v582 = vpop.f32.mrb[0].mxu0
  %583 = vmatprep.mubr.bf16.mxu0 0
  %584 = vmatmul.mubr.bf16.gmra.mrb[0].mxu0 %v337
  %v585 = vpop.f32.mrb[0].mxu0
  %v586 = vadd.f32 %v89, %v585
  %v587 = vpop.f32.mrb[0].mxu0
  %v588 = vpop.f32.mrb[0].mxu0
  %v589 = vadd.f32 %v89, %v588
  %v590 = vpop.f32.mrb[0].mxu0
  %591 = vmatprep.mubr.bf16.mxu0 0
  %592 = vmatmul.mubr.bf16.gmra.mrb[0].mxu0 %v340
  %v593 = vpop.f32.mrb[0].mxu0
  %v594 = vadd.f32 %v89, %v593
  %v595 = vpop.f32.mrb[0].mxu0
  %v596 = vpop.f32.mrb[0].mxu0
  %v597 = vadd.f32 %v89, %v596
  %v598 = vpop.f32.mrb[0].mxu0
  %599 = vmatprep.mubr.bf16.mxu0 0
  %600 = vmatmul.mubr.bf16.gmra.mrb[0].mxu0 %v343
  %v601 = vpop.f32.mrb[0].mxu0
  %v602 = vadd.f32 %v89, %v601
  %v603 = vpop.f32.mrb[0].mxu0
  %v604 = vpop.f32.mrb[0].mxu0
  %v605 = vadd.f32 %v89, %v604
  %v606 = vpop.f32.mrb[0].mxu0
  %607 = vmatprep.mubr.bf16.mxu0 0
  %608 = vmatmul.mubr.bf16.gmra.mrb[0].mxu0 %v346
  %v609 = vpop.f32.mrb[0].mxu0
  %v610 = vadd.f32 %v89, %v609
  %v611 = vpop.f32.mrb[0].mxu0
  %v612 = vpop.f32.mrb[0].mxu0
  %v613 = vadd.f32 %v89, %v612
  %v614 = vpop.f32.mrb[0].mxu0
  %615 = vmatprep.mubr.bf16.mxu0 0
  %616 = vmatmul.mubr.bf16.gmra.mrb[0].mxu0 %v349
  %v617 = vpop.f32.mrb[0].mxu0
  %v618 = vadd.f32 %v89, %v617
  %v619 = vpop.f32.mrb[0].mxu0
  %v620 = vpop.f32.mrb[0].mxu0
  %v621 = vadd.f32 %v89, %v620
  %v622 = vpop.f32.mrb[0].mxu0
  %623 = vmatprep.mubr.bf16.mxu0 0
  %624 = vmatmul.mubr.bf16.gmra.mrb[0].mxu0 %v352
  %v625 = vpop.f32.mrb[0].mxu0
  %v626 = vadd.f32 %v89, %v625
  %v627 = vpop.f32.mrb[0].mxu0
  %v628 = vpop.f32.mrb[0].mxu0
  %v629 = vadd.f32 %v89, %v628
  %v630 = vpop.f32.mrb[0].mxu0
  %631 = vmatprep.mubr.bf16.mxu0 0
  %632 = vmatmul.mubr.bf16.gmra.mrb[0].mxu0 %v355
  %v633 = vpop.f32.mrb[0].mxu0
  %v634 = vadd.f32 %v89, %v633
  %v635 = vpop.f32.mrb[0].mxu0
  %v636 = vpop.f32.mrb[0].mxu0
  %v637 = vadd.f32 %v89, %v636
  %v638 = vpop.f32.mrb[0].mxu0
  %639 = vmatprep.mubr.bf16.mxu0 0
  %640 = vmatmul.mubr.bf16.gmra.mrb[0].mxu0 %v358
  %v641 = vpop.f32.mrb[0].mxu0
  %v642 = vadd.f32 %v89, %v641
  %v643 = vpop.f32.mrb[0].mxu0
  %v644 = vpop.f32.mrb[0].mxu0
  %v645 = vadd.f32 %v89, %v644
  %v646 = vpop.f32.mrb[0].mxu0
  %647 = vmatprep.mubr.bf16.mxu0 0
  %648 = vmatmul.mubr.bf16.gmra.mrb[0].mxu0 %v361
  %v649 = vpop.f32.mrb[0].mxu0
  %v650 = vadd.f32 %v89, %v649
  %v651 = vpop.f32.mrb[0].mxu0
  %v652 = vpop.f32.mrb[0].mxu0
  %v653 = vadd.f32 %v89, %v652
  %v654 = vpop.f32.mrb[0].mxu0
  %655 = vdwg.mxu0
  %v656 = vmax.f32 %v402, 0.0
  %v657 = vmax.f32 %v405, 0.0
  %v658 = vmax.f32 %v410, 0.0
  %v659 = vmax.f32 %v413, 0.0
  %v660 = vmax.f32 %v418, 0.0
  %v661 = vmax.f32 %v421, 0.0
  %v662 = vmax.f32 %v426, 0.0
  %v663 = vmax.f32 %v429, 0.0
  %v664 = vmax.f32 %v434, 0.0
  %v665 = vmax.f32 %v437, 0.0
  %v666 = vmax.f32 %v442, 0.0
  %v667 = vmax.f32 %v445, 0.0
  %v668 = vmax.f32 %v450, 0.0
  %v669 = vmax.f32 %v453, 0.0
  %v670 = vmax.f32 %v458, 0.0
  %v671 = vmax.f32 %v461, 0.0
  %v672 = vmax.f32 %v466, 0.0
  %v673 = vmax.f32 %v469, 0.0
  %v674 = vmax.f32 %v474, 0.0
  %v675 = vmax.f32 %v477, 0.0
  %v676 = vmax.f32 %v482, 0.0
  %v677 = vmax.f32 %v485, 0.0
  %v678 = vmax.f32 %v490, 0.0
  %v679 = vmax.f32 %v493, 0.0
  %v680 = vmax.f32 %v498, 0.0
  %v681 = vmax.f32 %v501, 0.0
  %v682 = vmax.f32 %v506, 0.0
  %v683 = vmax.f32 %v509, 0.0
  %v684 = vmax.f32 %v514, 0.0
  %v685 = vmax.f32 %v517, 0.0
  %v686 = vmax.f32 %v522, 0.0
  %v687 = vmax.f32 %v525, 0.0
  %v688 = vmax.f32 %v530, 0.0
  %v689 = vmax.f32 %v533, 0.0
  %v690 = vmax.f32 %v538, 0.0
  %v691 = vmax.f32 %v541, 0.0
  %v692 = vmax.f32 %v546, 0.0
  %v693 = vmax.f32 %v549, 0.0
  %v694 = vmax.f32 %v554, 0.0
  %v695 = vmax.f32 %v557, 0.0
  %v696 = vmax.f32 %v562, 0.0
  %v697 = vmax.f32 %v565, 0.0
  %v698 = vmax.f32 %v570, 0.0
  %v699 = vmax.f32 %v573, 0.0
  %v700 = vmax.f32 %v578, 0.0
  %v701 = vmax.f32 %v581, 0.0
  %v702 = vmax.f32 %v586, 0.0
  %v703 = vmax.f32 %v589, 0.0
  %v704 = vmax.f32 %v594, 0.0
  %v705 = vmax.f32 %v597, 0.0
  %v706 = vmax.f32 %v602, 0.0
  %v707 = vmax.f32 %v605, 0.0
  %v708 = vmax.f32 %v610, 0.0
  %v709 = vmax.f32 %v613, 0.0
  %v710 = vmax.f32 %v618, 0.0
  %v711 = vmax.f32 %v621, 0.0
  %v712 = vmax.f32 %v626, 0.0
  %v713 = vmax.f32 %v629, 0.0
  %v714 = vmax.f32 %v634, 0.0
  %v715 = vmax.f32 %v637, 0.0
  %v716 = vmax.f32 %v642, 0.0
  %v717 = vmax.f32 %v645, 0.0
  %v718 = vmax.f32 %v650, 0.0
  %v719 = vmax.f32 %v653, 0.0
  %v720 = vpack.c.bf16 %v657, %v656
  %v721 = vpack.c.bf16 %v659, %v658
  %v722 = vpack.c.bf16 %v661, %v660
  %v723 = vpack.c.bf16 %v663, %v662
  %v724 = vpack.c.bf16 %v665, %v664
  %v725 = vpack.c.bf16 %v667, %v666
  %v726 = vpack.c.bf16 %v669, %v668
  %v727 = vpack.c.bf16 %v671, %v670
  %v728 = vpack.c.bf16 %v673, %v672
  %v729 = vpack.c.bf16 %v675, %v674
  %v730 = vpack.c.bf16 %v677, %v676
  %v731 = vpack.c.bf16 %v679, %v678
  %v732 = vpack.c.bf16 %v681, %v680
  %v733 = vpack.c.bf16 %v683, %v682
  %v734 = vpack.c.bf16 %v685, %v684
  %v735 = vpack.c.bf16 %v687, %v686
  %v736 = vpack.c.bf16 %v689, %v688
  %v737 = vpack.c.bf16 %v691, %v690
  %v738 = vpack.c.bf16 %v693, %v692
  %v739 = vpack.c.bf16 %v695, %v694
  %v740 = vpack.c.bf16 %v697, %v696
  %v741 = vpack.c.bf16 %v699, %v698
  %v742 = vpack.c.bf16 %v701, %v700
  %v743 = vpack.c.bf16 %v703, %v702
  %v744 = vpack.c.bf16 %v705, %v704
  %v745 = vpack.c.bf16 %v707, %v706
  %v746 = vpack.c.bf16 %v709, %v708
  %v747 = vpack.c.bf16 %v711, %v710
  %v748 = vpack.c.bf16 %v713, %v712
  %v749 = vpack.c.bf16 %v715, %v714
  %v750 = vpack.c.bf16 %v717, %v716
  %v751 = vpack.c.bf16 %v719, %v718
  %v784 = vunpack.c.l.b16 %v720
  %v785 = vunpack.c.h.b16 %v720
  %v786 = vunpack.c.l.b16 %v721
  %v787 = vunpack.c.h.b16 %v721
  %v788 = vunpack.c.l.b16 %v722
  %v789 = vunpack.c.h.b16 %v722
  %v790 = vunpack.c.l.b16 %v723
  %v791 = vunpack.c.h.b16 %v723
  %v792 = vunpack.c.l.b16 %v724
  %v793 = vunpack.c.h.b16 %v724
  %v794 = vunpack.c.l.b16 %v725
  %v795 = vunpack.c.h.b16 %v725
  %v796 = vunpack.c.l.b16 %v726
  %v797 = vunpack.c.h.b16 %v726
  %v798 = vunpack.c.l.b16 %v727
  %v799 = vunpack.c.h.b16 %v727
  %v800 = vunpack.c.l.b16 %v728
  %v801 = vunpack.c.h.b16 %v728
  %v802 = vunpack.c.l.b16 %v729
  %v803 = vunpack.c.h.b16 %v729
  %v804 = vunpack.c.l.b16 %v730
  %v805 = vunpack.c.h.b16 %v730
  %v806 = vunpack.c.l.b16 %v731
  %v807 = vunpack.c.h.b16 %v731
  %v808 = vunpack.c.l.b16 %v732
  %v809 = vunpack.c.h.b16 %v732
  %v810 = vunpack.c.l.b16 %v733
  %v811 = vunpack.c.h.b16 %v733
  %v812 = vunpack.c.l.b16 %v734
  %v813 = vunpack.c.h.b16 %v734
  %v814 = vunpack.c.l.b16 %v735
  %v815 = vunpack.c.h.b16 %v735
  %v816 = vunpack.c.l.b16 %v736
  %v817 = vunpack.c.h.b16 %v736
  %v818 = vunpack.c.l.b16 %v737
  %v819 = vunpack.c.h.b16 %v737
  %v820 = vunpack.c.l.b16 %v738
  %v821 = vunpack.c.h.b16 %v738
  %v822 = vunpack.c.l.b16 %v739
  %v823 = vunpack.c.h.b16 %v739
  %v824 = vunpack.c.l.b16 %v740
  %v825 = vunpack.c.h.b16 %v740
  %v826 = vunpack.c.l.b16 %v741
  %v827 = vunpack.c.h.b16 %v741
  %v828 = vunpack.c.l.b16 %v742
  %v829 = vunpack.c.h.b16 %v742
  %v830 = vunpack.c.l.b16 %v743
  %v831 = vunpack.c.h.b16 %v743
  %v832 = vunpack.c.l.b16 %v744
  %v833 = vunpack.c.h.b16 %v744
  %v834 = vunpack.c.l.b16 %v745
  %v835 = vunpack.c.h.b16 %v745
  %v836 = vunpack.c.l.b16 %v746
  %v837 = vunpack.c.h.b16 %v746
  %v838 = vunpack.c.l.b16 %v747
  %v839 = vunpack.c.h.b16 %v747
  %v840 = vunpack.c.l.b16 %v748
  %v841 = vunpack.c.h.b16 %v748
  %v842 = vunpack.c.l.b16 %v749
  %v843 = vunpack.c.h.b16 %v749
  %v844 = vunpack.c.l.b16 %v750
  %v845 = vunpack.c.h.b16 %v750
  %v846 = vunpack.c.l.b16 %v751
  %v847 = vunpack.c.h.b16 %v751
  %v848 = vpack.c.b16 %v784, %v784
  %v849 = vpack.c.b16 %v785, %v785
  %v850 = vpack.c.b16 %v786, %v786
  %v851 = vpack.c.b16 %v787, %v787
  %v852 = vpack.c.b16 %v788, %v788
  %v853 = vpack.c.b16 %v789, %v789
  %v854 = vpack.c.b16 %v790, %v790
  %v855 = vpack.c.b16 %v791, %v791
  %v856 = vpack.c.b16 %v792, %v792
  %v857 = vpack.c.b16 %v793, %v793
  %v858 = vpack.c.b16 %v794, %v794
  %v859 = vpack.c.b16 %v795, %v795
  %v860 = vpack.c.b16 %v796, %v796
  %v861 = vpack.c.b16 %v797, %v797
  %v862 = vpack.c.b16 %v798, %v798
  %v863 = vpack.c.b16 %v799, %v799
  %v864 = vpack.c.b16 %v800, %v800
  %v865 = vpack.c.b16 %v801, %v801
  %v866 = vpack.c.b16 %v802, %v802
  %v867 = vpack.c.b16 %v803, %v803
  %v868 = vpack.c.b16 %v804, %v804
  %v869 = vpack.c.b16 %v805, %v805
  %v870 = vpack.c.b16 %v806, %v806
  %v871 = vpack.c.b16 %v807, %v807
  %v872 = vpack.c.b16 %v808, %v808
  %v873 = vpack.c.b16 %v809, %v809
  %v874 = vpack.c.b16 %v810, %v810
  %v875 = vpack.c.b16 %v811, %v811
  %v876 = vpack.c.b16 %v812, %v812
  %v877 = vpack.c.b16 %v813, %v813
  %v878 = vpack.c.b16 %v814, %v814
  %v879 = vpack.c.b16 %v815, %v815
  %v880 = vpack.c.b16 %v816, %v816
  %v881 = vpack.c.b16 %v817, %v817
  %v882 = vpack.c.b16 %v818, %v818
  %v883 = vpack.c.b16 %v819, %v819
  %v884 = vpack.c.b16 %v820, %v820
  %v885 = vpack.c.b16 %v821, %v821
  %v886 = vpack.c.b16 %v822, %v822
  %v887 = vpack.c.b16 %v823, %v823
  %v888 = vpack.c.b16 %v824, %v824
  %v889 = vpack.c.b16 %v825, %v825
  %v890 = vpack.c.b16 %v826, %v826
  %v891 = vpack.c.b16 %v827, %v827
  %v892 = vpack.c.b16 %v828, %v828
  %v893 = vpack.c.b16 %v829, %v829
  %v894 = vpack.c.b16 %v830, %v830
  %v895 = vpack.c.b16 %v831, %v831
  %v896 = vpack.c.b16 %v832, %v832
  %v897 = vpack.c.b16 %v833, %v833
  %v898 = vpack.c.b16 %v834, %v834
  %v899 = vpack.c.b16 %v835, %v835
  %v900 = vpack.c.b16 %v836, %v836
  %v901 = vpack.c.b16 %v837, %v837
  %v902 = vpack.c.b16 %v838, %v838
  %v903 = vpack.c.b16 %v839, %v839
  %v904 = vpack.c.b16 %v840, %v840
  %v905 = vpack.c.b16 %v841, %v841
  %v906 = vpack.c.b16 %v842, %v842
  %v907 = vpack.c.b16 %v843, %v843
  %v908 = vpack.c.b16 %v844, %v844
  %v909 = vpack.c.b16 %v845, %v845
  %v910 = vpack.c.b16 %v846, %v846
  %v911 = vpack.c.b16 %v847, %v847
  %976 = vst [vmem:[%s3] sm:$0xf] %v848
  %977 = vst [vmem:[%s3 + $0x4] sm:$0xf] %v849
  %978 = vst [vmem:[%s3 + $0x8] sm:$0xf] %v850
  %979 = vst [vmem:[%s3 + $0xc] sm:$0xf] %v851
  %980 = vst [vmem:[%s3 + $0x10] sm:$0xf] %v852
  %981 = vst [vmem:[%s3 + $0x14] sm:$0xf] %v853
  %982 = vst [vmem:[%s3 + $0x18] sm:$0xf] %v854
  %983 = vst [vmem:[%s3 + $0x1c] sm:$0xf] %v855
  %984 = vst [vmem:[%s3 + $0x20] sm:$0xf] %v856
  %985 = vst [vmem:[%s3 + $0x24] sm:$0xf] %v857
  %986 = vst [vmem:[%s3 + $0x28] sm:$0xf] %v858
  %987 = vst [vmem:[%s3 + $0x2c] sm:$0xf] %v859
  %988 = vst [vmem:[%s3 + $0x30] sm:$0xf] %v860
  %989 = vst [vmem:[%s3 + $0x34] sm:$0xf] %v861
  %990 = vst [vmem:[%s3 + $0x38] sm:$0xf] %v862
  %991 = vst [vmem:[%s3 + $0x3c] sm:$0xf] %v863
  %992 = vst [vmem:[%s3 + $0x40] sm:$0xf] %v864
  %993 = vst [vmem:[%s3 + $0x44] sm:$0xf] %v865
  %994 = vst [vmem:[%s3 + $0x48] sm:$0xf] %v866
  %995 = vst [vmem:[%s3 + $0x4c] sm:$0xf] %v867
  %996 = vst [vmem:[%s3 + $0x50] sm:$0xf] %v868
  %997 = vst [vmem:[%s3 + $0x54] sm:$0xf] %v869
  %998 = vst [vmem:[%s3 + $0x58] sm:$0xf] %v870
  %999 = vst [vmem:[%s3 + $0x5c] sm:$0xf] %v871
  %1000 = vst [vmem:[%s3 + $0x60] sm:$0xf] %v872
  %1001 = vst [vmem:[%s3 + $0x64] sm:$0xf] %v873
  %1002 = vst [vmem:[%s3 + $0x68] sm:$0xf] %v874
  %1003 = vst [vmem:[%s3 + $0x6c] sm:$0xf] %v875
  %1004 = vst [vmem:[%s3 + $0x70] sm:$0xf] %v876
  %1005 = vst [vmem:[%s3 + $0x74] sm:$0xf] %v877
  %1006 = vst [vmem:[%s3 + $0x78] sm:$0xf] %v878
  %1007 = vst [vmem:[%s3 + $0x7c] sm:$0xf] %v879
  %1008 = vst [vmem:[%s3 + $0x80] sm:$0xf] %v880
  %1009 = vst [vmem:[%s3 + $0x84] sm:$0xf] %v881
  %1010 = vst [vmem:[%s3 + $0x88] sm:$0xf] %v882
  %1011 = vst [vmem:[%s3 + $0x8c] sm:$0xf] %v883
  %1012 = vst [vmem:[%s3 + $0x90] sm:$0xf] %v884
  %1013 = vst [vmem:[%s3 + $0x94] sm:$0xf] %v885
  %1014 = vst [vmem:[%s3 + $0x98] sm:$0xf] %v886
  %1015 = vst [vmem:[%s3 + $0x9c] sm:$0xf] %v887
  %1016 = vst [vmem:[%s3 + $0xa0] sm:$0xf] %v888
  %1017 = vst [vmem:[%s3 + $0xa4] sm:$0xf] %v889
  %1018 = vst [vmem:[%s3 + $0xa8] sm:$0xf] %v890
  %1019 = vst [vmem:[%s3 + $0xac] sm:$0xf] %v891
  %1020 = vst [vmem:[%s3 + $0xb0] sm:$0xf] %v892
  %1021 = vst [vmem:[%s3 + $0xb4] sm:$0xf] %v893
  %1022 = vst [vmem:[%s3 + $0xb8] sm:$0xf] %v894
  %1023 = vst [vmem:[%s3 + $0xbc] sm:$0xf] %v895
  %1024 = vst [vmem:[%s3 + $0xc0] sm:$0xf] %v896
  %1025 = vst [vmem:[%s3 + $0xc4] sm:$0xf] %v897
  %1026 = vst [vmem:[%s3 + $0xc8] sm:$0xf] %v898
  %1027 = vst [vmem:[%s3 + $0xcc] sm:$0xf] %v899
  %1028 = vst [vmem:[%s3 + $0xd0] sm:$0xf] %v900
  %1029 = vst [vmem:[%s3 + $0xd4] sm:$0xf] %v901
  %1030 = vst [vmem:[%s3 + $0xd8] sm:$0xf] %v902
  %1031 = vst [vmem:[%s3 + $0xdc] sm:$0xf] %v903
  %1032 = vst [vmem:[%s3 + $0xe0] sm:$0xf] %v904
  %1033 = vst [vmem:[%s3 + $0xe4] sm:$0xf] %v905
  %1034 = vst [vmem:[%s3 + $0xe8] sm:$0xf] %v906
  %1035 = vst [vmem:[%s3 + $0xec] sm:$0xf] %v907
  %1036 = vst [vmem:[%s3 + $0xf0] sm:$0xf] %v908
  %1037 = vst [vmem:[%s3 + $0xf4] sm:$0xf] %v909
  %1038 = vst [vmem:[%s3 + $0xf8] sm:$0xf] %v910
  %1039 = vst [vmem:[%s3 + $0xfc] sm:$0xf] %v911
  // Predicated region
  $region14: #{sconv2d_forward.5} parent=0 // pred_check
    _
  $region15: #{sconv2d_forward.5} parent=0 // pred_check_branch
    %1041 = sbr.rel (0) target = $region17
  $region16: #{sconv2d_forward.5} parent=0 // pred_region
    _
  $region17: #{sconv2d_forward.5} parent=0 // pred_fallthru
    _
  // Predicated region
  $region18: #{sconv2d_forward.5} parent=0 // pred_check
    _
  $region19: #{sconv2d_forward.5} parent=0 // pred_check_branch
    %1043 = sbr.rel (0) target = $region21
  $region20: #{sconv2d_forward.5} parent=0 // pred_region
    _
  $region21: #{sconv2d_forward.5} parent=0 // pred_fallthru
    _

// kernel: sconv2d_forward.9
$region0: #{sconv2d_forward.9}
  #allocation0 [shape = 'u32[]', space=smem, size = 0x4, offset = 0x4, fixed_abs, tag = 'smem constant byte address 0x4 - core index']
  #allocation1 [shape = 'u32[144,128]{1,0:T(1,128)}', space=vmem, size = 0x12000, scoped, tag = 'internal scratch']
  %s0 = inlined_call_operand.vmem [shape: bf16[2,16,16,128], index: 0, kind: input, shape index: {}]
  %s1 = inlined_call_operand.vmem [shape: bf16[2,8,16,128], index: 1, kind: input, shape index: {}]
  %s2 = inlined_call_operand.vmem [shape: bf16[2,4,16,128], index: 2, kind: input, shape index: {}]
  %s3 = inlined_call_operand.vmem [shape: bf16[2,2,16,128], index: 3, kind: input, shape index: {}]
  %s4 = inlined_call_operand.vmem [shape: f32[1,1,128], index: 4, kind: input, shape index: {}]
  %s5 = inlined_call_operand.vmem [shape: f32[1,1,128], index: 5, kind: input, shape index: {}]
  %s6 = inlined_call_operand.vmem [shape: f32[2,16,16,128], index: 6, kind: output, shape index: {}]
  %s7 = sld [smem:[#allocation0]]
  $region57: #{sconv2d_forward.9} parent=0
    _
  %s9 = ssub.s32 1, %s7
  %s10 = scalar_select 0, %s9, %s7
  loop: start=0, step=1, limit=4
  $region2: #{sconv2d_forward.9} parent=0 // loop_pre_header
    _
  $region3: #{sconv2d_forward.9} parent=0 // loop_header
    %s12 = sphi 0, %s16
    %p13 = scmp.ge.s32.totalorder %s12, 4
    %s19 = sphi 0, %s31
    %s20 = sphi 0, %s27
    %s21 = sphi 0, %s19
    %s22 = sphi 0, %s20
    %s23 = sphi 0, %s21
    %s24 = sphi 0, %s22
    %s36 = sphi 0, %s38
    %s39 = sphi 0, %s36
    %s40 = sphi 0, %s39
    %s56 = sphi 0, %s40
    %s64 = sphi 0, %s66
    %s67 = sphi 0, %s64
    %s68 = sphi 0, %s67
    %s84 = sphi 0, %s68
    %s92 = sphi 0, %s94
    %s95 = sphi 0, %s92
    %s96 = sphi 0, %s95
    %s112 = sphi 0, %s96
    %s120 = sphi 0, %s122
    %s123 = sphi 0, %s120
    %s124 = sphi 0, %s123
    %s140 = sphi 0, %s124
    %s144 = sphi 0, %s144
    %s146 = sphi 0, %s144
    %s147 = sphi 0, %s146
    %s161 = sphi 0, %s147
    %s165 = sphi 0, %s165
    %s167 = sphi 0, %s165
    %s168 = sphi 0, %s167
    %s182 = sphi 0, %s168
    %s190 = sphi 0, %s192
    %s193 = sphi 0, %s190
    %s194 = sphi 0, %s193
    %s210 = sphi 0, %s194
  $region4: #{sconv2d_forward.9} parent=0 // loop_header_branch
    %15 = sbr.rel (%p13) target = $region8
  $region5: #{sconv2d_forward.9} parent=0 // loop_body
    %s17 = ssub.s32 %s12, 1
    %s18 = ssub.s32 %s12, 2
    %s25 = sadd.s32 1, %s20
    %p26 = scmp.ge.s32.totalorder %s25, 1
    %s27 = scalar_select %p26, 0, %s25
    %s28 = sadd.s32 1, %s19
    %s29 = scalar_select %p26, %s28, %s19
    %p30 = scmp.ge.s32.totalorder %s29, 2
    %s31 = scalar_select %p30, 0, %s29
    %s32 = ssub.s32 %s19, %s31
    %s33 = ssub.s32 %s20, %s27
    %s34 = sor.u32 %s32, %s33
    %p35 = scmp.eq.s32.totalorder %s34, 0
    %s37 = sadd.s32 %s36, 1
    %s38 = scalar_select %p35, %s36, %s37
    %p41 = pneg %p35
    %p42 = scmp.eq.s32.totalorder %s12, 1
    %p43 = por %p41, %p42
    %p44 = scmp.ne.s32.totalorder %s36, %s39
    %p45 = scmp.eq.s32.totalorder %s12, 0
    %p46 = por %p44, %p45
    %p47 = scmp.ne.s32.totalorder %s36, %s39
    %p48 = scmp.eq.s32.totalorder %s17, 1
    %p49 = por %p47, %p48
    %p50 = scmp.ne.s32.totalorder %s39, %s40
    %p51 = scmp.eq.s32.totalorder %s17, 0
    %p52 = por %p50, %p51
    %p53 = scmp.ne.s32.totalorder %s39, %s40
    %p54 = scmp.eq.s32.totalorder %s18, 1
    %p55 = por %p53, %p54
    %p57 = scmp.ne.s32.totalorder %s40, %s56
    %p58 = scmp.eq.s32.totalorder %s18, 0
    %p59 = por %p57, %p58
    %s60 = ssub.s32 %s19, %s31
    %s61 = ssub.s32 %s20, %s27
    %s62 = sor.u32 %s60, %s61
    %p63 = scmp.eq.s32.totalorder %s62, 0
    %s65 = sadd.s32 %s64, 1
    %s66 = scalar_select %p63, %s64, %s65
    %p69 = pneg %p63
    %p70 = scmp.eq.s32.totalorder %s12, 1
    %p71 = por %p69, %p70
    %p72 = scmp.ne.s32.totalorder %s64, %s67
    %p73 = scmp.eq.s32.totalorder %s12, 0
    %p74 = por %p72, %p73
    %p75 = scmp.ne.s32.totalorder %s64, %s67
    %p76 = scmp.eq.s32.totalorder %s17, 1
    %p77 = por %p75, %p76
    %p78 = scmp.ne.s32.totalorder %s67, %s68
    %p79 = scmp.eq.s32.totalorder %s17, 0
    %p80 = por %p78, %p79
    %p81 = scmp.ne.s32.totalorder %s67, %s68
    %p82 = scmp.eq.s32.totalorder %s18, 1
    %p83 = por %p81, %p82
    %p85 = scmp.ne.s32.totalorder %s68, %s84
    %p86 = scmp.eq.s32.totalorder %s18, 0
    %p87 = por %p85, %p86
    %s88 = ssub.s32 %s19, %s31
    %s89 = ssub.s32 %s20, %s27
    %s90 = sor.u32 %s88, %s89
    %p91 = scmp.eq.s32.totalorder %s90, 0
    %s93 = sadd.s32 %s92, 1
    %s94 = scalar_select %p91, %s92, %s93
    %p97 = pneg %p91
    %p98 = scmp.eq.s32.totalorder %s12, 1
    %p99 = por %p97, %p98
    %p100 = scmp.ne.s32.totalorder %s92, %s95
    %p101 = scmp.eq.s32.totalorder %s12, 0
    %p102 = por %p100, %p101
    %p103 = scmp.ne.s32.totalorder %s92, %s95
    %p104 = scmp.eq.s32.totalorder %s17, 1
    %p105 = por %p103, %p104
    %p106 = scmp.ne.s32.totalorder %s95, %s96
    %p107 = scmp.eq.s32.totalorder %s17, 0
    %p108 = por %p106, %p107
    %p109 = scmp.ne.s32.totalorder %s95, %s96
    %p110 = scmp.eq.s32.totalorder %s18, 1
    %p111 = por %p109, %p110
    %p113 = scmp.ne.s32.totalorder %s96, %s112
    %p114 = scmp.eq.s32.totalorder %s18, 0
    %p115 = por %p113, %p114
    %s116 = ssub.s32 %s19, %s31
    %s117 = ssub.s32 %s20, %s27
    %s118 = sor.u32 %s116, %s117
    %p119 = scmp.eq.s32.totalorder %s118, 0
    %s121 = sadd.s32 %s120, 1
    %s122 = scalar_select %p119, %s120, %s121
    %p125 = pneg %p119
    %p126 = scmp.eq.s32.totalorder %s12, 1
    %p127 = por %p125, %p126
    %p128 = scmp.ne.s32.totalorder %s120, %s123
    %p129 = scmp.eq.s32.totalorder %s12, 0
    %p130 = por %p128, %p129
    %p131 = scmp.ne.s32.totalorder %s120, %s123
    %p132 = scmp.eq.s32.totalorder %s17, 1
    %p133 = por %p131, %p132
    %p134 = scmp.ne.s32.totalorder %s123, %s124
    %p135 = scmp.eq.s32.totalorder %s17, 0
    %p136 = por %p134, %p135
    %p137 = scmp.ne.s32.totalorder %s123, %s124
    %p138 = scmp.eq.s32.totalorder %s18, 1
    %p139 = por %p137, %p138
    %p141 = scmp.ne.s32.totalorder %s124, %s140
    %p142 = scmp.eq.s32.totalorder %s18, 0
    %p143 = por %p141, %p142
    %s145 = sadd.s32 %s144, 1
    %p148 = scmp.eq.s32.totalorder %s12, 1
    %p149 = scmp.ne.s32.totalorder %s144, %s146
    %p150 = scmp.eq.s32.totalorder %s12, 0
    %p151 = por %p149, %p150
    %p152 = scmp.ne.s32.totalorder %s144, %s146
    %p153 = scmp.eq.s32.totalorder %s17, 1
    %p154 = por %p152, %p153
    %p155 = scmp.ne.s32.totalorder %s146, %s147
    %p156 = scmp.eq.s32.totalorder %s17, 0
    %p157 = por %p155, %p156
    %p158 = scmp.ne.s32.totalorder %s146, %s147
    %p159 = scmp.eq.s32.totalorder %s18, 1
    %p160 = por %p158, %p159
    %p162 = scmp.ne.s32.totalorder %s147, %s161
    %p163 = scmp.eq.s32.totalorder %s18, 0
    %p164 = por %p162, %p163
    %s166 = sadd.s32 %s165, 1
    %p169 = scmp.eq.s32.totalorder %s12, 1
    %p170 = scmp.ne.s32.totalorder %s165, %s167
    %p171 = scmp.eq.s32.totalorder %s12, 0
    %p172 = por %p170, %p171
    %p173 = scmp.ne.s32.totalorder %s165, %s167
    %p174 = scmp.eq.s32.totalorder %s17, 1
    %p175 = por %p173, %p174
    %p176 = scmp.ne.s32.totalorder %s167, %s168
    %p177 = scmp.eq.s32.totalorder %s17, 0
    %p178 = por %p176, %p177
    %p179 = scmp.ne.s32.totalorder %s167, %s168
    %p180 = scmp.eq.s32.totalorder %s18, 1
    %p181 = por %p179, %p180
    %p183 = scmp.ne.s32.totalorder %s168, %s182
    %p184 = scmp.eq.s32.totalorder %s18, 0
    %p185 = por %p183, %p184
    %s186 = ssub.s32 %s19, %s31
    %s187 = ssub.s32 %s20, %s27
    %s188 = sor.u32 %s186, %s187
    %p189 = scmp.eq.s32.totalorder %s188, 0
    %s191 = sadd.s32 %s190, 1
    %s192 = scalar_select %p189, %s190, %s191
    %p195 = pneg %p189
    %p196 = scmp.eq.s32.totalorder %s12, 1
    %p197 = por %p195, %p196
    %p198 = scmp.ne.s32.totalorder %s190, %s193
    %p199 = scmp.eq.s32.totalorder %s12, 0
    %p200 = por %p198, %p199
    %p201 = scmp.ne.s32.totalorder %s190, %s193
    %p202 = scmp.eq.s32.totalorder %s17, 1
    %p203 = por %p201, %p202
    %p204 = scmp.ne.s32.totalorder %s193, %s194
    %p205 = scmp.eq.s32.totalorder %s17, 0
    %p206 = por %p204, %p205
    %p207 = scmp.ne.s32.totalorder %s193, %s194
    %p208 = scmp.eq.s32.totalorder %s18, 1
    %p209 = por %p207, %p208
    %p211 = scmp.ne.s32.totalorder %s194, %s210
    %p212 = scmp.eq.s32.totalorder %s18, 0
    %p213 = por %p211, %p212
    %p214 = scmp.le.s32.totalorder 1, %s12
    %p215 = scmp.lt.s32.totalorder %s12, 3
    %p216 = pnand %p214, %p215
    %p217 = pneg %p216
    // Predicated region
    $region9: #{sconv2d_forward.9} parent=5 // pred_check
      _
    $region10: #{sconv2d_forward.9} parent=5 // pred_check_branch
      %219 = sbr.rel (%p216) target = $region12
    $region11: #{sconv2d_forward.9} parent=5 // pred_region
      %s220 = ssub.s32 %s12, 1
      // Predicated region
      $region13: #{sconv2d_forward.9} parent=11 // pred_check
        %p221 = pneg %p157
      $region14: #{sconv2d_forward.9} parent=11 // pred_check_branch
        %223 = sbr.rel (%p221) target = $region16
      $region15: #{sconv2d_forward.9} parent=11 // pred_region
        _
      $region16: #{sconv2d_forward.9} parent=11 // pred_fallthru
        _
      // Predicated region
      $region17: #{sconv2d_forward.9} parent=11 // pred_check
        %p224 = pneg %p178
      $region18: #{sconv2d_forward.9} parent=11 // pred_check_branch
        %226 = sbr.rel (%p224) target = $region20
      $region19: #{sconv2d_forward.9} parent=11 // pred_region
        _
      $region20: #{sconv2d_forward.9} parent=11 // pred_fallthru
        _
    $region12: #{sconv2d_forward.9} parent=5 // pred_fallthru
      _
    %p227 = scmp.lt.s32.totalorder %s12, 2
    // Predicated region
    $region21: #{sconv2d_forward.9} parent=5 // pred_check
      %p228 = pneg %p227
    $region22: #{sconv2d_forward.9} parent=5 // pred_check_branch
      %230 = sbr.rel (%p228) target = $region24
    $region23: #{sconv2d_forward.9} parent=5 // pred_region
      // Predicated region
      $region25: #{sconv2d_forward.9} parent=23 // pred_check
        %p231 = pneg %p46
      $region26: #{sconv2d_forward.9} parent=23 // pred_check_branch
        %233 = sbr.rel (%p231) target = $region28
      $region27: #{sconv2d_forward.9} parent=23 // pred_region
        %s234 = smul.u32 16, %s20
        %p235 = scmp.lt.s32.totalorder %s19, 1
        %s236 = scalar_select %p235, %s19, 1
        %p237 = scmp.lt.s32.totalorder %s234, 15
        %s238 = scalar_select %p237, %s234, 15
        %s239 = smul.addr %s238, 2
        %s240 = smul.addr %s236, 32
        %s241 = sadd.s32 %s239, %s240
        %s242 = smul.addr %s241, 4
        %s243 = scalar_lea.vmem %s0, %s242
        %s244 = smul.u32 16, %s20
      $region28: #{sconv2d_forward.9} parent=23 // pred_fallthru
        _
      // Predicated region
      $region29: #{sconv2d_forward.9} parent=23 // pred_check
        %p245 = pneg %p74
      $region30: #{sconv2d_forward.9} parent=23 // pred_check_branch
        %247 = sbr.rel (%p245) target = $region32
      $region31: #{sconv2d_forward.9} parent=23 // pred_region
        %s248 = smul.u32 8, %s20
        %p249 = scmp.lt.s32.totalorder %s19, 1
        %s250 = scalar_select %p249, %s19, 1
        %p251 = scmp.lt.s32.totalorder %s248, 7
        %s252 = scalar_select %p251, %s248, 7
        %s253 = smul.addr %s252, 2
        %s254 = smul.addr %s250, 16
        %s255 = sadd.s32 %s253, %s254
        %s256 = smul.addr %s255, 4
        %s257 = scalar_lea.vmem %s1, %s256
        %s258 = smul.u32 8, %s20
      $region32: #{sconv2d_forward.9} parent=23 // pred_fallthru
        _
      // Predicated region
      $region33: #{sconv2d_forward.9} parent=23 // pred_check
        %p259 = pneg %p102
      $region34: #{sconv2d_forward.9} parent=23 // pred_check_branch
        %261 = sbr.rel (%p259) target = $region36
      $region35: #{sconv2d_forward.9} parent=23 // pred_region
        %s262 = smul.u32 4, %s20
        %p263 = scmp.lt.s32.totalorder %s19, 1
        %s264 = scalar_select %p263, %s19, 1
        %p265 = scmp.lt.s32.totalorder %s262, 3
        %s266 = scalar_select %p265, %s262, 3
        %s267 = smul.addr %s266, 2
        %s268 = smul.addr %s264, 8
        %s269 = sadd.s32 %s267, %s268
        %s270 = smul.addr %s269, 4
        %s271 = scalar_lea.vmem %s2, %s270
        %s272 = smul.u32 4, %s20
      $region36: #{sconv2d_forward.9} parent=23 // pred_fallthru
        _
      // Predicated region
      $region37: #{sconv2d_forward.9} parent=23 // pred_check
        %p273 = pneg %p130
      $region38: #{sconv2d_forward.9} parent=23 // pred_check_branch
        %275 = sbr.rel (%p273) target = $region40
      $region39: #{sconv2d_forward.9} parent=23 // pred_region
        %s276 = smul.u32 2, %s20
        %p277 = scmp.lt.s32.totalorder %s19, 1
        %s278 = scalar_select %p277, %s19, 1
        %p279 = scmp.lt.s32.totalorder %s276, 1
        %s280 = scalar_select %p279, %s276, 1
        %s281 = smul.addr %s280, 2
        %s282 = smul.addr %s278, 4
        %s283 = sadd.s32 %s281, %s282
        %s284 = smul.addr %s283, 4
        %s285 = scalar_lea.vmem %s3, %s284
        %s286 = smul.u32 2, %s20
      $region40: #{sconv2d_forward.9} parent=23 // pred_fallthru
        _
    $region24: #{sconv2d_forward.9} parent=5 // pred_fallthru
      _
    %p287 = scmp.le.s32.totalorder 1, %s12
    %p288 = scmp.lt.s32.totalorder %s12, 3
    %p289 = pnand %p287, %p288
    %p290 = pneg %p289
    // Predicated region
    $region41: #{sconv2d_forward.9} parent=5 // pred_check
      _
    $region42: #{sconv2d_forward.9} parent=5 // pred_check_branch
      %292 = sbr.rel (%p289) target = $region44
    $region43: #{sconv2d_forward.9} parent=5 // pred_region
      %s293 = ssub.s32 %s12, 1
      %s294 = smul.u32 16, %s22
      %p295 = scmp.lt.s32.totalorder %s21, 1
      %s296 = scalar_select %p295, %s21, 1
      %p297 = scmp.lt.s32.totalorder %s294, 15
      %s298 = scalar_select %p297, %s294, 15
      %s299 = smul.addr %s298, 2
      %s300 = smul.addr %s296, 32
      %s301 = sadd.s32 %s299, %s300
      %s302 = smul.addr %s301, 4
      %s303 = scalar_lea.vmem %s0, %s302
      %p304 = pneg %p52
      %p305 = pneg %p49
      %s306 = smul.u32 8, %s22
      %p307 = scmp.lt.s32.totalorder %s21, 1
      %s308 = scalar_select %p307, %s21, 1
      %p309 = scmp.lt.s32.totalorder %s306, 7
      %s310 = scalar_select %p309, %s306, 7
      %s311 = smul.addr %s310, 2
      %s312 = smul.addr %s308, 16
      %s313 = sadd.s32 %s311, %s312
      %s314 = smul.addr %s313, 4
      %s315 = scalar_lea.vmem %s1, %s314
      %p316 = pneg %p80
      %p317 = pneg %p77
      %s318 = smul.u32 4, %s22
      %p319 = scmp.lt.s32.totalorder %s21, 1
      %s320 = scalar_select %p319, %s21, 1
      %p321 = scmp.lt.s32.totalorder %s318, 3
      %s322 = scalar_select %p321, %s318, 3
      %s323 = smul.addr %s322, 2
      %s324 = smul.addr %s320, 8
      %s325 = sadd.s32 %s323, %s324
      %s326 = smul.addr %s325, 4
      %s327 = scalar_lea.vmem %s2, %s326
      %p328 = pneg %p108
      %p329 = pneg %p105
      %s330 = smul.u32 2, %s22
      %p331 = scmp.lt.s32.totalorder %s21, 1
      %s332 = scalar_select %p331, %s21, 1
      %p333 = scmp.lt.s32.totalorder %s330, 1
      %s334 = scalar_select %p333, %s330, 1
      %s335 = smul.addr %s334, 2
      %s336 = smul.addr %s332, 4
      %s337 = sadd.s32 %s335, %s336
      %s338 = smul.addr %s337, 4
      %s339 = scalar_lea.vmem %s3, %s338
      %p340 = pneg %p136
      %p341 = pneg %p133
      %p342 = pneg %p157
      %p343 = pneg %p154
      %p344 = pneg %p178
      %p345 = pneg %p175
      %p346 = pneg %p206
      %p347 = pneg %p203
      %s348 = smul.u32 16, %s22
      %p349 = scmp.lt.s32.totalorder %s21, 1
      %s350 = scalar_select %p349, %s21, 1
      %p351 = scmp.lt.s32.totalorder %s348, 15
      %s352 = scalar_select %p351, %s348, 15
      %s353 = smul.addr %s352, 2
      %s354 = smul.addr %s350, 32
      %s355 = sadd.s32 %s353, %s354
      %s356 = smul.addr %s355, 8
      %s357 = scalar_lea.vmem %s6, %s356
      %s358 = smul.u32 16, %s22
      %p359 = scmp.lt.s32.totalorder %s21, 1
      %s360 = scalar_select %p359, %s21, 1
      %p361 = scmp.lt.s32.totalorder %s358, 15
      %s362 = scalar_select %p361, %s358, 15
      %s363 = smul.addr %s362, 2
      %s364 = smul.addr %s360, 32
      %s365 = sadd.s32 %s363, %s364
      %s366 = smul.addr %s365, 4
      %s367 = scalar_lea.vmem %s0, %s366
      %s368 = smul.u32 16, %s22
      %s369 = smul.u32 8, %s22
      %p370 = scmp.lt.s32.totalorder %s21, 1
      %s371 = scalar_select %p370, %s21, 1
      %p372 = scmp.lt.s32.totalorder %s369, 7
      %s373 = scalar_select %p372, %s369, 7
      %s374 = smul.addr %s373, 2
      %s375 = smul.addr %s371, 16
      %s376 = sadd.s32 %s374, %s375
      %s377 = smul.addr %s376, 4
      %s378 = scalar_lea.vmem %s1, %s377
      %s379 = smul.u32 8, %s22
      %s380 = smul.u32 4, %s22
      %p381 = scmp.lt.s32.totalorder %s21, 1
      %s382 = scalar_select %p381, %s21, 1
      %p383 = scmp.lt.s32.totalorder %s380, 3
      %s384 = scalar_select %p383, %s380, 3
      %s385 = smul.addr %s384, 2
      %s386 = smul.addr %s382, 8
      %s387 = sadd.s32 %s385, %s386
      %s388 = smul.addr %s387, 4
      %s389 = scalar_lea.vmem %s2, %s388
      %s390 = smul.u32 4, %s22
      %s391 = smul.u32 2, %s22
      %p392 = scmp.lt.s32.totalorder %s21, 1
      %s393 = scalar_select %p392, %s21, 1
      %p394 = scmp.lt.s32.totalorder %s391, 1
      %s395 = scalar_select %p394, %s391, 1
      %s396 = smul.addr %s395, 2
      %s397 = smul.addr %s393, 4
      %s398 = sadd.s32 %s396, %s397
      %s399 = smul.addr %s398, 4
      %s400 = scalar_lea.vmem %s3, %s399
      %s401 = smul.u32 2, %s22
      %s402 = smul.u32 16, %s22
      %p403 = scmp.lt.s32.totalorder %s21, 1
      %s404 = scalar_select %p403, %s21, 1
      %p405 = scmp.lt.s32.totalorder %s402, 15
      %s406 = scalar_select %p405, %s402, 15
      %s407 = smul.addr %s406, 2
      %s408 = smul.addr %s404, 32
      %s409 = sadd.s32 %s407, %s408
      %s410 = smul.addr %s409, 8
      %s411 = scalar_lea.vmem %s6, %s410
      %s412 = smul.u32 16, %s22
      %v413 = vld [vmem:[%s367] sm:$0xf]
      %v414 = vld [vmem:[%s367 + $0x4] sm:$0xf]
      %v415 = vld [vmem:[%s367 + $0x8] sm:$0xf]
      %v416 = vld [vmem:[%s367 + $0xc] sm:$0xf]
      %v417 = vld [vmem:[%s367 + $0x10] sm:$0xf]
      %v418 = vld [vmem:[%s367 + $0x14] sm:$0xf]
      %v419 = vld [vmem:[%s367 + $0x18] sm:$0xf]
      %v420 = vld [vmem:[%s367 + $0x1c] sm:$0xf]
      %v421 = vld [vmem:[%s367 + $0x20] sm:$0xf]
      %v422 = vld [vmem:[%s367 + $0x24] sm:$0xf]
      %v423 = vld [vmem:[%s367 + $0x28] sm:$0xf]
      %v424 = vld [vmem:[%s367 + $0x2c] sm:$0xf]
      %v425 = vld [vmem:[%s367 + $0x30] sm:$0xf]
      %v426 = vld [vmem:[%s367 + $0x34] sm:$0xf]
      %v427 = vld [vmem:[%s367 + $0x38] sm:$0xf]
      %v428 = vld [vmem:[%s367 + $0x3c] sm:$0xf]
      %v429 = vld [vmem:[%s367 + $0x40] sm:$0xf]
      %v430 = vld [vmem:[%s367 + $0x44] sm:$0xf]
      %v431 = vld [vmem:[%s367 + $0x48] sm:$0xf]
      %v432 = vld [vmem:[%s367 + $0x4c] sm:$0xf]
      %v433 = vld [vmem:[%s367 + $0x50] sm:$0xf]
      %v434 = vld [vmem:[%s367 + $0x54] sm:$0xf]
      %v435 = vld [vmem:[%s367 + $0x58] sm:$0xf]
      %v436 = vld [vmem:[%s367 + $0x5c] sm:$0xf]
      %v437 = vld [vmem:[%s367 + $0x60] sm:$0xf]
      %v438 = vld [vmem:[%s367 + $0x64] sm:$0xf]
      %v439 = vld [vmem:[%s367 + $0x68] sm:$0xf]
      %v440 = vld [vmem:[%s367 + $0x6c] sm:$0xf]
      %v441 = vld [vmem:[%s367 + $0x70] sm:$0xf]
      %v442 = vld [vmem:[%s367 + $0x74] sm:$0xf]
      %v443 = vld [vmem:[%s367 + $0x78] sm:$0xf]
      %v444 = vld [vmem:[%s367 + $0x7c] sm:$0xf]
      %v445 = vunpack.c.l.bf16 %v413
      %v446 = vunpack.c.l.bf16 %v414
      %v447 = vunpack.c.l.bf16 %v415
      %v448 = vunpack.c.l.bf16 %v416
      %v449 = vunpack.c.l.bf16 %v417
      %v450 = vunpack.c.l.bf16 %v418
      %v451 = vunpack.c.l.bf16 %v419
      %v452 = vunpack.c.l.bf16 %v420
      %v453 = vunpack.c.l.bf16 %v421
      %v454 = vunpack.c.l.bf16 %v422
      %v455 = vunpack.c.l.bf16 %v423
      %v456 = vunpack.c.l.bf16 %v424
      %v457 = vunpack.c.l.bf16 %v425
      %v458 = vunpack.c.l.bf16 %v426
      %v459 = vunpack.c.l.bf16 %v427
      %v460 = vunpack.c.l.bf16 %v428
      %v461 = vunpack.c.l.bf16 %v429
      %v462 = vunpack.c.l.bf16 %v430
      %v463 = vunpack.c.l.bf16 %v431
      %v464 = vunpack.c.l.bf16 %v432
      %v465 = vunpack.c.l.bf16 %v433
      %v466 = vunpack.c.l.bf16 %v434
      %v467 = vunpack.c.l.bf16 %v435
      %v468 = vunpack.c.l.bf16 %v436
      %v469 = vunpack.c.l.bf16 %v437
      %v470 = vunpack.c.l.bf16 %v438
      %v471 = vunpack.c.l.bf16 %v439
      %v472 = vunpack.c.l.bf16 %v440
      %v473 = vunpack.c.l.bf16 %v441
      %v474 = vunpack.c.l.bf16 %v442
      %v475 = vunpack.c.l.bf16 %v443
      %v476 = vunpack.c.l.bf16 %v444
      %v477 = vld [vmem:[%s378] sm:$0xf]
      %v478 = vld [vmem:[%s378 + $0x4] sm:$0xf]
      %v479 = vld [vmem:[%s378 + $0x8] sm:$0xf]
      %v480 = vld [vmem:[%s378 + $0xc] sm:$0xf]
      %v481 = vld [vmem:[%s378 + $0x10] sm:$0xf]
      %v482 = vld [vmem:[%s378 + $0x14] sm:$0xf]
      %v483 = vld [vmem:[%s378 + $0x18] sm:$0xf]
      %v484 = vld [vmem:[%s378 + $0x1c] sm:$0xf]
      %v485 = vld [vmem:[%s378 + $0x20] sm:$0xf]
      %v486 = vld [vmem:[%s378 + $0x24] sm:$0xf]
      %v487 = vld [vmem:[%s378 + $0x28] sm:$0xf]
      %v488 = vld [vmem:[%s378 + $0x2c] sm:$0xf]
      %v489 = vld [vmem:[%s378 + $0x30] sm:$0xf]
      %v490 = vld [vmem:[%s378 + $0x34] sm:$0xf]
      %v491 = vld [vmem:[%s378 + $0x38] sm:$0xf]
      %v492 = vld [vmem:[%s378 + $0x3c] sm:$0xf]
      %v493 = vunpack.c.l.bf16 %v477
      %v494 = vunpack.c.l.bf16 %v478
      %v495 = vunpack.c.l.bf16 %v479
      %v496 = vunpack.c.l.bf16 %v480
      %v497 = vunpack.c.l.bf16 %v481
      %v498 = vunpack.c.l.bf16 %v482
      %v499 = vunpack.c.l.bf16 %v483
      %v500 = vunpack.c.l.bf16 %v484
      %v501 = vunpack.c.l.bf16 %v485
      %v502 = vunpack.c.l.bf16 %v486
      %v503 = vunpack.c.l.bf16 %v487
      %v504 = vunpack.c.l.bf16 %v488
      %v505 = vunpack.c.l.bf16 %v489
      %v506 = vunpack.c.l.bf16 %v490
      %v507 = vunpack.c.l.bf16 %v491
      %v508 = vunpack.c.l.bf16 %v492
      %v509 = vadd.f32 %v445, %v493
      %v510 = vadd.f32 %v446, %v494
      %v511 = vadd.f32 %v447, %v493
      %v512 = vadd.f32 %v448, %v494
      %v513 = vadd.f32 %v449, %v495
      %v514 = vadd.f32 %v450, %v496
      %v515 = vadd.f32 %v451, %v495
      %v516 = vadd.f32 %v452, %v496
      %v517 = vadd.f32 %v453, %v497
      %v518 = vadd.f32 %v454, %v498
      %v519 = vadd.f32 %v455, %v497
      %v520 = vadd.f32 %v456, %v498
      %v521 = vadd.f32 %v457, %v499
      %v522 = vadd.f32 %v458, %v500
      %v523 = vadd.f32 %v459, %v499
      %v524 = vadd.f32 %v460, %v500
      %v525 = vadd.f32 %v461, %v501
      %v526 = vadd.f32 %v462, %v502
      %v527 = vadd.f32 %v463, %v501
      %v528 = vadd.f32 %v464, %v502
      %v529 = vadd.f32 %v465, %v503
      %v530 = vadd.f32 %v466, %v504
      %v531 = vadd.f32 %v467, %v503
      %v532 = vadd.f32 %v468, %v504
      %v533 = vadd.f32 %v469, %v505
      %v534 = vadd.f32 %v470, %v506
      %v535 = vadd.f32 %v471, %v505
      %v536 = vadd.f32 %v472, %v506
      %v537 = vadd.f32 %v473, %v507
      %v538 = vadd.f32 %v474, %v508
      %v539 = vadd.f32 %v475, %v507
      %v540 = vadd.f32 %v476, %v508
      %v541 = vld [vmem:[%s389] sm:$0xf]
      %v542 = vld [vmem:[%s389 + $0x4] sm:$0xf]
      %v543 = vld [vmem:[%s389 + $0x8] sm:$0xf]
      %v544 = vld [vmem:[%s389 + $0xc] sm:$0xf]
      %v545 = vld [vmem:[%s389 + $0x10] sm:$0xf]
      %v546 = vld [vmem:[%s389 + $0x14] sm:$0xf]
      %v547 = vld [vmem:[%s389 + $0x18] sm:$0xf]
      %v548 = vld [vmem:[%s389 + $0x1c] sm:$0xf]
      %v549 = vunpack.c.l.bf16 %v541
      %v550 = vunpack.c.l.bf16 %v542
      %v551 = vunpack.c.l.bf16 %v543
      %v552 = vunpack.c.l.bf16 %v544
      %v553 = vunpack.c.l.bf16 %v545
      %v554 = vunpack.c.l.bf16 %v546
      %v555 = vunpack.c.l.bf16 %v547
      %v556 = vunpack.c.l.bf16 %v548
      %v557 = vadd.f32 %v509, %v549
      %v558 = vadd.f32 %v510, %v550
      %v559 = vadd.f32 %v511, %v549
      %v560 = vadd.f32 %v512, %v550
      %v561 = vadd.f32 %v513, %v549
      %v562 = vadd.f32 %v514, %v550
      %v563 = vadd.f32 %v515, %v549
      %v564 = vadd.f32 %v516, %v550
      %v565 = vadd.f32 %v517, %v551
      %v566 = vadd.f32 %v518, %v552
      %v567 = vadd.f32 %v519, %v551
      %v568 = vadd.f32 %v520, %v552
      %v569 = vadd.f32 %v521, %v551
      %v570 = vadd.f32 %v522, %v552
      %v571 = vadd.f32 %v523, %v551
      %v572 = vadd.f32 %v524, %v552
      %v573 = vadd.f32 %v525, %v553
      %v574 = vadd.f32 %v526, %v554
      %v575 = vadd.f32 %v527, %v553
      %v576 = vadd.f32 %v528, %v554
      %v577 = vadd.f32 %v529, %v553
      %v578 = vadd.f32 %v530, %v554
      %v579 = vadd.f32 %v531, %v553
      %v580 = vadd.f32 %v532, %v554
      %v581 = vadd.f32 %v533, %v555
      %v582 = vadd.f32 %v534, %v556
      %v583 = vadd.f32 %v535, %v555
      %v584 = vadd.f32 %v536, %v556
      %v585 = vadd.f32 %v537, %v555
      %v586 = vadd.f32 %v538, %v556
      %v587 = vadd.f32 %v539, %v555
      %v588 = vadd.f32 %v540, %v556
      %v589 = vld [vmem:[%s400] sm:$0xf]
      %v590 = vld [vmem:[%s400 + $0x4] sm:$0xf]
      %v591 = vld [vmem:[%s400 + $0x8] sm:$0xf]
      %v592 = vld [vmem:[%s400 + $0xc] sm:$0xf]
      %v593 = vunpack.c.l.bf16 %v589
      %v594 = vunpack.c.l.bf16 %v590
      %v595 = vunpack.c.l.bf16 %v591
      %v596 = vunpack.c.l.bf16 %v592
      %v597 = vadd.f32 %v557, %v593
      %v598 = vadd.f32 %v558, %v594
      %v599 = vadd.f32 %v559, %v593
      %v600 = vadd.f32 %v560, %v594
      %v601 = vadd.f32 %v561, %v593
      %v602 = vadd.f32 %v562, %v594
      %v603 = vadd.f32 %v563, %v593
      %v604 = vadd.f32 %v564, %v594
      %v605 = vadd.f32 %v565, %v593
      %v606 = vadd.f32 %v566, %v594
      %v607 = vadd.f32 %v567, %v593
      %v608 = vadd.f32 %v568, %v594
      %v609 = vadd.f32 %v569, %v593
      %v610 = vadd.f32 %v570, %v594
      %v611 = vadd.f32 %v571, %v593
      %v612 = vadd.f32 %v572, %v594
      %v613 = vadd.f32 %v573, %v595
      %v614 = vadd.f32 %v574, %v596
      %v615 = vadd.f32 %v575, %v595
      %v616 = vadd.f32 %v576, %v596
      %v617 = vadd.f32 %v577, %v595
      %v618 = vadd.f32 %v578, %v596
      %v619 = vadd.f32 %v579, %v595
      %v620 = vadd.f32 %v580, %v596
      %v621 = vadd.f32 %v581, %v595
      %v622 = vadd.f32 %v582, %v596
      %v623 = vadd.f32 %v583, %v595
      %v624 = vadd.f32 %v584, %v596
      %v625 = vadd.f32 %v585, %v595
      %v626 = vadd.f32 %v586, %v596
      %v627 = vadd.f32 %v587, %v595
      %v628 = vadd.f32 %v588, %v596
      %v629 = vld [vmem:[%s4] sm:$0x1]
      %v631 = vlaneseq
      %v632 = vshrl.u32 %v631, 7
      %v633 = vsub.s32 0, %v632
      %v634 = vrot.slane %v629, %v633
      %v636 = vmul.f32 %v597, %v634
      %v637 = vmul.f32 %v598, %v634
      %v638 = vmul.f32 %v599, %v634
      %v639 = vmul.f32 %v600, %v634
      %v640 = vmul.f32 %v601, %v634
      %v641 = vmul.f32 %v602, %v634
      %v642 = vmul.f32 %v603, %v634
      %v643 = vmul.f32 %v604, %v634
      %v644 = vmul.f32 %v605, %v634
      %v645 = vmul.f32 %v606, %v634
      %v646 = vmul.f32 %v607, %v634
      %v647 = vmul.f32 %v608, %v634
      %v648 = vmul.f32 %v609, %v634
      %v649 = vmul.f32 %v610, %v634
      %v650 = vmul.f32 %v611, %v634
      %v651 = vmul.f32 %v612, %v634
      %v652 = vmul.f32 %v613, %v634
      %v653 = vmul.f32 %v614, %v634
      %v654 = vmul.f32 %v615, %v634
      %v655 = vmul.f32 %v616, %v634
      %v656 = vmul.f32 %v617, %v634
      %v657 = vmul.f32 %v618, %v634
      %v658 = vmul.f32 %v619, %v634
      %v659 = vmul.f32 %v620, %v634
      %v660 = vmul.f32 %v621, %v634
      %v661 = vmul.f32 %v622, %v634
      %v662 = vmul.f32 %v623, %v634
      %v663 = vmul.f32 %v624, %v634
      %v664 = vmul.f32 %v625, %v634
      %v665 = vmul.f32 %v626, %v634
      %v666 = vmul.f32 %v627, %v634
      %v667 = vmul.f32 %v628, %v634
      %v668 = vld [vmem:[%s5] sm:$0x1]
      %v670 = vlaneseq
      %v671 = vshrl.u32 %v670, 7
      %v672 = vsub.s32 0, %v671
      %v673 = vrot.slane %v668, %v672
      %v675 = vadd.f32 %v636, %v673
      %v676 = vadd.f32 %v637, %v673
      %v677 = vadd.f32 %v638, %v673
      %v678 = vadd.f32 %v639, %v673
      %v679 = vadd.f32 %v640, %v673
      %v680 = vadd.f32 %v641, %v673
      %v681 = vadd.f32 %v642, %v673
      %v682 = vadd.f32 %v643, %v673
      %v683 = vadd.f32 %v644, %v673
      %v684 = vadd.f32 %v645, %v673
      %v685 = vadd.f32 %v646, %v673
      %v686 = vadd.f32 %v647, %v673
      %v687 = vadd.f32 %v648, %v673
      %v688 = vadd.f32 %v649, %v673
      %v689 = vadd.f32 %v650, %v673
      %v690 = vadd.f32 %v651, %v673
      %v691 = vadd.f32 %v652, %v673
      %v692 = vadd.f32 %v653, %v673
      %v693 = vadd.f32 %v654, %v673
      %v694 = vadd.f32 %v655, %v673
      %v695 = vadd.f32 %v656, %v673
      %v696 = vadd.f32 %v657, %v673
      %v697 = vadd.f32 %v658, %v673
      %v698 = vadd.f32 %v659, %v673
      %v699 = vadd.f32 %v660, %v673
      %v700 = vadd.f32 %v661, %v673
      %v701 = vadd.f32 %v662, %v673
      %v702 = vadd.f32 %v663, %v673
      %v703 = vadd.f32 %v664, %v673
      %v704 = vadd.f32 %v665, %v673
      %v705 = vadd.f32 %v666, %v673
      %v706 = vadd.f32 %v667, %v673
      %707 = vst [vmem:[%s411] sm:$0xff] %v675
      %708 = vst [vmem:[%s411 + $0x8] sm:$0xff] %v676
      %709 = vst [vmem:[%s411 + $0x10] sm:$0xff] %v677
      %710 = vst [vmem:[%s411 + $0x18] sm:$0xff] %v678
      %711 = vst [vmem:[%s411 + $0x20] sm:$0xff] %v679
      %712 = vst [vmem:[%s411 + $0x28] sm:$0xff] %v680
      %713 = vst [vmem:[%s411 + $0x30] sm:$0xff] %v681
      %714 = vst [vmem:[%s411 + $0x38] sm:$0xff] %v682
      %715 = vst [vmem:[%s411 + $0x40] sm:$0xff] %v683
      %716 = vst [vmem:[%s411 + $0x48] sm:$0xff] %v684
      %717 = vst [vmem:[%s411 + $0x50] sm:$0xff] %v685
      %718 = vst [vmem:[%s411 + $0x58] sm:$0xff] %v686
      %719 = vst [vmem:[%s411 + $0x60] sm:$0xff] %v687
      %720 = vst [vmem:[%s411 + $0x68] sm:$0xff] %v688
      %721 = vst [vmem:[%s411 + $0x70] sm:$0xff] %v689
      %722 = vst [vmem:[%s411 + $0x78] sm:$0xff] %v690
      %723 = vst [vmem:[%s411 + $0x80] sm:$0xff] %v691
      %724 = vst [vmem:[%s411 + $0x88] sm:$0xff] %v692
      %725 = vst [vmem:[%s411 + $0x90] sm:$0xff] %v693
      %726 = vst [vmem:[%s411 + $0x98] sm:$0xff] %v694
      %727 = vst [vmem:[%s411 + $0xa0] sm:$0xff] %v695
      %728 = vst [vmem:[%s411 + $0xa8] sm:$0xff] %v696
      %729 = vst [vmem:[%s411 + $0xb0] sm:$0xff] %v697
      %730 = vst [vmem:[%s411 + $0xb8] sm:$0xff] %v698
      %731 = vst [vmem:[%s411 + $0xc0] sm:$0xff] %v699
      %732 = vst [vmem:[%s411 + $0xc8] sm:$0xff] %v700
      %733 = vst [vmem:[%s411 + $0xd0] sm:$0xff] %v701
      %734 = vst [vmem:[%s411 + $0xd8] sm:$0xff] %v702
      %735 = vst [vmem:[%s411 + $0xe0] sm:$0xff] %v703
      %736 = vst [vmem:[%s411 + $0xe8] sm:$0xff] %v704
      %737 = vst [vmem:[%s411 + $0xf0] sm:$0xff] %v705
      %738 = vst [vmem:[%s411 + $0xf8] sm:$0xff] %v706
      %s739 = smul.u32 16, %s22
      %p740 = scmp.lt.s32.totalorder %s21, 1
      %s741 = scalar_select %p740, %s21, 1
      %p742 = scmp.lt.s32.totalorder %s739, 15
      %s743 = scalar_select %p742, %s739, 15
      %s744 = smul.addr %s743, 2
      %s745 = smul.addr %s741, 32
      %s746 = sadd.s32 %s744, %s745
      %s747 = smul.addr %s746, 8
      %s748 = scalar_lea.vmem %s6, %s747
      // Predicated region
      $region45: #{sconv2d_forward.9} parent=43 // pred_check
        %p749 = pneg %p203
      $region46: #{sconv2d_forward.9} parent=43 // pred_check_branch
        %751 = sbr.rel (%p749) target = $region48
      $region47: #{sconv2d_forward.9} parent=43 // pred_region
        %s752 = smul.u32 16, %s22
      $region48: #{sconv2d_forward.9} parent=43 // pred_fallthru
        _
    $region44: #{sconv2d_forward.9} parent=5 // pred_fallthru
      _
    %p753 = scmp.le.s32.totalorder 2, %s12
    // Predicated region
    $region49: #{sconv2d_forward.9} parent=5 // pred_check
      %p754 = pneg %p753
    $region50: #{sconv2d_forward.9} parent=5 // pred_check_branch
      %756 = sbr.rel (%p754) target = $region52
    $region51: #{sconv2d_forward.9} parent=5 // pred_region
      %s757 = ssub.s32 %s12, 2
      // Predicated region
      $region53: #{sconv2d_forward.9} parent=51 // pred_check
        %p758 = pneg %p209
      $region54: #{sconv2d_forward.9} parent=51 // pred_check_branch
        %760 = sbr.rel (%p758) target = $region56
      $region55: #{sconv2d_forward.9} parent=51 // pred_region
        %s761 = smul.u32 16, %s24
        %p762 = scmp.lt.s32.totalorder %s23, 1
        %s763 = scalar_select %p762, %s23, 1
        %p764 = scmp.lt.s32.totalorder %s761, 15
        %s765 = scalar_select %p764, %s761, 15
        %s766 = smul.addr %s765, 2
        %s767 = smul.addr %s763, 32
        %s768 = sadd.s32 %s766, %s767
        %s769 = smul.addr %s768, 8
        %s770 = scalar_lea.vmem %s6, %s769
      $region56: #{sconv2d_forward.9} parent=51 // pred_fallthru
        _
    $region52: #{sconv2d_forward.9} parent=5 // pred_fallthru
      _
  $region6: #{sconv2d_forward.9} parent=0 // loop_footer
    %s16 = sadd.s32 1, %s12
  $region7: #{sconv2d_forward.9} parent=0 // loop_footer_branch
    %11 = sbr.rel target = $region3
  $region8: #{sconv2d_forward.9} parent=0 // loop_exit
    _

</llo_original>
